<compile_context>
chip_gen: v7x
topology: tpu7x:2x2x1
jax: 0.10.0
libtpu: 0.0.40
codegen_flags: <defaults>
</compile_context>

<pallas_src>
import functools

import jax
import jax.numpy as jnp
from jax.experimental import pallas as pl
from jax.experimental.pallas import tpu as pltpu

IN_F = 242
HID = 600
OUT_F = 3

IN_PAD = 256    # 242 -> 256
HID_PAD = 640   # 600 -> 640  (already lane-dense; do NOT pad to 768)
OUT_PAD = 128   # 3   -> 128


def _round_up(n, m):
    return (n + m - 1) // m * m


def _pick_tb(B):
    """Batch tile: lane/sublane-friendly and >= 2 grid steps once B >= 256."""
    if B >= 2048:
        return 512                      # amortize per-step overhead, >=4 steps
    if B >= 512:
        return 256
    if B >= 256:
        return 128                      # guarantees >=2 steps -> both v7x TCs
    return _round_up(max(B, 16), 16)    # bf16 vreg tile is (16, 128)


def mlp_kernel(x_ref, w1_ref, b1_ref, w2_ref, b2_ref, w3_ref, b3_ref, o_ref):
    # fc1 (bf16 MXU, f32 accumulate) + f32 bias/ReLU
    h = jnp.dot(x_ref[...], w1_ref[...], preferred_element_type=jnp.float32)
    h = jnp.maximum(h + b1_ref[...], 0.0)
    # dropout(p=0.5) -> identity (eval mode)
    # fc2
    h = jnp.dot(h.astype(jnp.bfloat16), w2_ref[...],
                preferred_element_type=jnp.float32)
    h = jnp.maximum(h + b2_ref[...], 0.0)
    # dropout(p=0.5) -> identity (eval mode)
    # fc3 (output padded to 128 lanes; padded columns are exactly zero)
    out = jnp.dot(h.astype(jnp.bfloat16), w3_ref[...],
                  preferred_element_type=jnp.float32)
    o_ref[...] = (out + b3_ref[...]).astype(o_ref.dtype)


def prepare_params(w1, b1, w2, b2, w3, b3):
    """Pad + cast weights ONCE at model-load time.

    w*: (in, out) f32, b*: (out,) f32.  Returns the cached, kernel-ready
    (padded, bf16-weight / f32-bias) parameter tuple.
    """
    bf16 = jnp.bfloat16
    w1p = jnp.zeros((IN_PAD, HID_PAD), bf16).at[:IN_F, :HID].set(w1.astype(bf16))
    b1p = jnp.zeros((1, HID_PAD), jnp.float32).at[0, :HID].set(b1)
    w2p = jnp.zeros((HID_PAD, HID_PAD), bf16).at[:HID, :HID].set(w2.astype(bf16))
    b2p = jnp.zeros((1, HID_PAD), jnp.float32).at[0, :HID].set(b2)
    w3p = jnp.zeros((HID_PAD, OUT_PAD), bf16).at[:HID, :OUT_F].set(w3.astype(bf16))
    b3p = jnp.zeros((1, OUT_PAD), jnp.float32).at[0, :OUT_F].set(b3)
    return (w1p, b1p, w2p, b2p, w3p, b3p)


@functools.partial(jax.jit, static_argnames=("tb",))
def mlp_forward(x, params, tb=None):
    """x: (B, 242) f32; params: output of prepare_params(). Returns (B, 3) f32."""
    w1p, b1p, w2p, b2p, w3p, b3p = params
    B = x.shape[0]
    if tb is None:
        tb = _pick_tb(B)
    B_pad = _round_up(B, tb)

    # Only the activation is padded per call; weights are pre-padded/cast.
    xp = jnp.zeros((B_pad, IN_PAD), jnp.bfloat16)
    xp = xp.at[:B, :IN_F].set(x.astype(jnp.bfloat16))

    resident = lambda shape: pl.BlockSpec(shape, lambda i: (0, 0))

    out = pl.pallas_call(
        mlp_kernel,
        out_shape=jax.ShapeDtypeStruct((B_pad, OUT_PAD), jnp.float32),
        grid=(B_pad // tb,),
        in_specs=[
            pl.BlockSpec((tb, IN_PAD), lambda i: (i, 0)),   # x tiled on batch
            resident((IN_PAD, HID_PAD)),                    # weights VMEM-resident
            resident((1, HID_PAD)),
            resident((HID_PAD, HID_PAD)),
            resident((1, HID_PAD)),
            resident((HID_PAD, OUT_PAD)),
            resident((1, OUT_PAD)),
        ],
        out_specs=pl.BlockSpec((tb, OUT_PAD), lambda i: (i, 0)),
        compiler_params=pltpu.CompilerParams(
            dimension_semantics=("parallel",),
            vmem_limit_bytes=(32 << 20) if tb >= 512 else (16 << 20),
        ),
    )(xp, w1p, b1p, w2p, b2p, w3p, b3p)

    return out[:B, :OUT_F]


def init_linear(key, fan_in, fan_out):
    # PyTorch nn.Linear default init: U(-1/sqrt(fan_in), 1/sqrt(fan_in))
    kw, kb = jax.random.split(key)
    bound = 1.0 / jnp.sqrt(jnp.float32(fan_in))
    w = jax.random.uniform(kw, (fan_in, fan_out), jnp.float32, -bound, bound)
    b = jax.random.uniform(kb, (fan_out,), jnp.float32, -bound, bound)
    return w, b


def reference_forward(x, w1, b1, w2, b2, w3, b3):
    # Mirrors the kernel's bf16 quantization of MXU operands, f32 accumulation.
    q = lambda a: a.astype(jnp.bfloat16).astype(jnp.float32)
    h = jnp.maximum(jnp.dot(q(x), q(w1)) + b1, 0.0)
    h = jnp.maximum(jnp.dot(q(h), q(w2)) + b2, 0.0)
    return jnp.dot(q(h), q(w3)) + b3


if __name__ == "__main__":
    key = jax.random.PRNGKey(0)
    kx, k1, k2, k3 = jax.random.split(key, 4)

    B = 8
    x = jax.random.normal(kx, (B, IN_F), jnp.float32)

    w1, b1 = init_linear(k1, IN_F, HID)
    w2, b2 = init_linear(k2, HID, HID)
    w3, b3 = init_linear(k3, HID, OUT_F)

    # Done once at model-load time; cached padded/bf16 params.
    params = jax.block_until_ready(prepare_params(w1, b1, w2, b2, w3, b3))

    out = mlp_forward(x, params)
    out = jax.block_until_ready(out)

    ref = reference_forward(x, w1, b1, w2, b2, w3, b3)
    assert out.shape == (B, OUT_F)
    assert jnp.allclose(out, ref, atol=2e-3, rtol=2e-3), (
        float(jnp.max(jnp.abs(out - ref))))

    print("KERNEL_OK")
</pallas_src>

<mosaic_0001>
module attributes {stable_mosaic.version = 11 : i64} {
  func.func @mlp_kernel(%arg0: i32, %arg1: memref<16x256xbf16, #tpu.memory_space<vmem>>, %arg2: memref<256x640xbf16, #tpu.memory_space<vmem>>, %arg3: memref<1x640xf32, #tpu.memory_space<vmem>>, %arg4: memref<640x640xbf16, #tpu.memory_space<vmem>>, %arg5: memref<1x640xf32, #tpu.memory_space<vmem>>, %arg6: memref<640x128xbf16, #tpu.memory_space<vmem>>, %arg7: memref<1x128xf32, #tpu.memory_space<vmem>>, %arg8: memref<16x128xf32, #tpu.memory_space<vmem>>) attributes {dimension_semantics = [#tpu.dimension_semantics<parallel>], iteration_bounds = array<i64: 1>, scalar_prefetch = 0 : i64, scratch_operands = 0 : i64, tpu.core_type = #tpu.core_type<tc>, window_params = [{transform_indices = @transform_0, window_bounds = array<i64: 16, 256>}, {pipeline_mode = #tpu.pipeline_mode<synchronous>, transform_indices = @transform_1, window_bounds = array<i64: 256, 640>}, {pipeline_mode = #tpu.pipeline_mode<synchronous>, transform_indices = @transform_2, window_bounds = array<i64: 1, 640>}, {pipeline_mode = #tpu.pipeline_mode<synchronous>, transform_indices = @transform_3, window_bounds = array<i64: 640, 640>}, {pipeline_mode = #tpu.pipeline_mode<synchronous>, transform_indices = @transform_4, window_bounds = array<i64: 1, 640>}, {pipeline_mode = #tpu.pipeline_mode<synchronous>, transform_indices = @transform_5, window_bounds = array<i64: 640, 128>}, {pipeline_mode = #tpu.pipeline_mode<synchronous>, transform_indices = @transform_6, window_bounds = array<i64: 1, 128>}, {transform_indices = @transform_7, window_bounds = array<i64: 16, 128>}]} {
    %c0 = arith.constant 0 : index
    %c0_0 = arith.constant 0 : index
    %0 = vector.load %arg1[%c0, %c0_0] : memref<16x256xbf16, #tpu.memory_space<vmem>>, vector<16x256xbf16>
    %c0_1 = arith.constant 0 : index
    %c0_2 = arith.constant 0 : index
    %1 = vector.load %arg2[%c0_1, %c0_2] : memref<256x640xbf16, #tpu.memory_space<vmem>>, vector<256x640xbf16>
    %cst = arith.constant dense<0.000000e+00> : vector<16x640xf32>
    %2 = tpu.matmul %0, %1, %cst {dimension_numbers = #tpu.dot_dimension_numbers<[1], [0], [0], [1], [0, 0, 1, 1], [], []>} : vector<16x256xbf16>, vector<256x640xbf16>, vector<16x640xf32> -> vector<16x640xf32>
    %c0_3 = arith.constant 0 : index
    %c0_4 = arith.constant 0 : index
    %3 = vector.load %arg3[%c0_3, %c0_4] : memref<1x640xf32, #tpu.memory_space<vmem>>, vector<1x640xf32>
    %4 = vector.broadcast %3 : vector<1x640xf32> to vector<16x640xf32>
    %5 = arith.addf %2, %4 : vector<16x640xf32>
    %cst_5 = arith.constant 0.000000e+00 : f32
    %6 = vector.broadcast %cst_5 : f32 to vector<16x640xf32>
    %7 = arith.maximumf %5, %6 : vector<16x640xf32>
    %8 = arith.truncf %7 : vector<16x640xf32> to vector<16x640xbf16>
    %c0_6 = arith.constant 0 : index
    %c0_7 = arith.constant 0 : index
    %9 = vector.load %arg4[%c0_6, %c0_7] : memref<640x640xbf16, #tpu.memory_space<vmem>>, vector<640x640xbf16>
    %cst_8 = arith.constant dense<0.000000e+00> : vector<16x640xf32>
    %10 = tpu.matmul %8, %9, %cst_8 {dimension_numbers = #tpu.dot_dimension_numbers<[1], [0], [0], [1], [0, 0, 1, 1], [], []>} : vector<16x640xbf16>, vector<640x640xbf16>, vector<16x640xf32> -> vector<16x640xf32>
    %c0_9 = arith.constant 0 : index
    %c0_10 = arith.constant 0 : index
    %11 = vector.load %arg5[%c0_9, %c0_10] : memref<1x640xf32, #tpu.memory_space<vmem>>, vector<1x640xf32>
    %12 = vector.broadcast %11 : vector<1x640xf32> to vector<16x640xf32>
    %13 = arith.addf %10, %12 : vector<16x640xf32>
    %cst_11 = arith.constant 0.000000e+00 : f32
    %14 = vector.broadcast %cst_11 : f32 to vector<16x640xf32>
    %15 = arith.maximumf %13, %14 : vector<16x640xf32>
    %16 = arith.truncf %15 : vector<16x640xf32> to vector<16x640xbf16>
    %c0_12 = arith.constant 0 : index
    %c0_13 = arith.constant 0 : index
    %17 = vector.load %arg6[%c0_12, %c0_13] : memref<640x128xbf16, #tpu.memory_space<vmem>>, vector<640x128xbf16>
    %cst_14 = arith.constant dense<0.000000e+00> : vector<16x128xf32>
    %18 = tpu.matmul %16, %17, %cst_14 {dimension_numbers = #tpu.dot_dimension_numbers<[1], [0], [0], [1], [0, 0, 1, 1], [], []>} : vector<16x640xbf16>, vector<640x128xbf16>, vector<16x128xf32> -> vector<16x128xf32>
    %c0_15 = arith.constant 0 : index
    %c0_16 = arith.constant 0 : index
    %19 = vector.load %arg7[%c0_15, %c0_16] : memref<1x128xf32, #tpu.memory_space<vmem>>, vector<1x128xf32>
    %20 = vector.broadcast %19 : vector<1x128xf32> to vector<16x128xf32>
    %21 = arith.addf %18, %20 : vector<16x128xf32>
    %c0_17 = arith.constant 0 : index
    %c0_18 = arith.constant 0 : index
    %22 = vector.load %arg8[%c0_17, %c0_18] : memref<16x128xf32, #tpu.memory_space<vmem>>, vector<16x128xf32>
    tpu.vector_store %arg8[%c0_17, %c0_18], %21 {strides = array<i32>} : memref<16x128xf32, #tpu.memory_space<vmem>>, vector<16x128xf32>,
    return
  }
  func.func @transform_0(%arg0: i32) -> (i32, i32) {
    %c0_i32 = arith.constant 0 : i32
    %c0_i32_0 = arith.constant 0 : i32
    return %arg0, %c0_i32 : i32, i32
  }
  func.func @transform_1(%arg0: i32) -> (i32, i32) {
    %c0_i32 = arith.constant 0 : i32
    %c0_i32_0 = arith.constant 0 : i32
    %c0_i32_1 = arith.constant 0 : i32
    return %c0_i32, %c0_i32_0 : i32, i32
  }
  func.func @transform_2(%arg0: i32) -> (i32, i32) {
    %c0_i32 = arith.constant 0 : i32
    %c0_i32_0 = arith.constant 0 : i32
    %c0_i32_1 = arith.constant 0 : i32
    return %c0_i32, %c0_i32_0 : i32, i32
  }
  func.func @transform_3(%arg0: i32) -> (i32, i32) {
    %c0_i32 = arith.constant 0 : i32
    %c0_i32_0 = arith.constant 0 : i32
    %c0_i32_1 = arith.constant 0 : i32
    return %c0_i32, %c0_i32_0 : i32, i32
  }
  func.func @transform_4(%arg0: i32) -> (i32, i32) {
    %c0_i32 = arith.constant 0 : i32
    %c0_i32_0 = arith.constant 0 : i32
    %c0_i32_1 = arith.constant 0 : i32
    return %c0_i32, %c0_i32_0 : i32, i32
  }
  func.func @transform_5(%arg0: i32) -> (i32, i32) {
    %c0_i32 = arith.constant 0 : i32
    %c0_i32_0 = arith.constant 0 : i32
    %c0_i32_1 = arith.constant 0 : i32
    return %c0_i32, %c0_i32_0 : i32, i32
  }
  func.func @transform_6(%arg0: i32) -> (i32, i32) {
    %c0_i32 = arith.constant 0 : i32
    %c0_i32_0 = arith.constant 0 : i32
    %c0_i32_1 = arith.constant 0 : i32
    return %c0_i32, %c0_i32_0 : i32, i32
  }
  func.func @transform_7(%arg0: i32) -> (i32, i32) {
    %c0_i32 = arith.constant 0 : i32
    %c0_i32_0 = arith.constant 0 : i32
    return %arg0, %c0_i32 : i32, i32
  }
}

</mosaic_0001>

<llo_original>
// kernel: mlp_forward.1
$region0: #{mlp_forward.1}
  #allocation0 [shape = 'u32[]', space=smem, size = 0x4, offset = 0x4, fixed_abs, tag = 'smem constant byte address 0x4 - core index']
  #allocation1 [shape = 'u32[144,128]{1,0:T(1,128)}', space=vmem, size = 0x12000, scoped, tag = 'internal scratch']
  %s0 = inlined_call_operand.vmem [shape: bf16[16,256], index: 0, kind: input, shape index: {}]
  %s1 = inlined_call_operand.hbm [shape: bf16[256,640], index: 1, kind: input, shape index: {}]
  %s2 = inlined_call_operand.vmem [shape: f32[1,640], index: 2, kind: input, shape index: {}]
  %s3 = inlined_call_operand.hbm [shape: bf16[640,640], index: 3, kind: input, shape index: {}]
  %s4 = inlined_call_operand.vmem [shape: f32[1,640], index: 4, kind: input, shape index: {}]
  %s5 = inlined_call_operand.hbm [shape: bf16[640,128], index: 5, kind: input, shape index: {}]
  %s6 = inlined_call_operand.vmem [shape: f32[1,128], index: 6, kind: input, shape index: {}]
  %s7 = inlined_call_operand.vmem [shape: f32[16,128], index: 7, kind: output, shape index: {}]
  %s8 = sld [smem:[#allocation0]]
  $region50: #{mlp_forward.1} parent=0
    _
  %s10 = ssub.s32 1, %s8
  %s11 = scalar_select 0, %s10, %s8
  $region1: #{mlp_forward.1} parent=0
    #allocation2 [shape = 'u8[327680]{0}', space=vmem, size = 0x50000, scoped, tag = 'input window, operand 1, single buffered']
    #allocation3 [shape = 's32[1]{0}', space=sflag, size = 0x4, scoped, tag = 'scoped memory for mlp_forward.1']
    #allocation4 [shape = 'u8[819200]{0}', space=vmem, size = 0xc8000, scoped, tag = 'input window, operand 3, single buffered']
    #allocation5 [shape = 's32[1]{0}', space=sflag, size = 0x4, scoped, tag = 'scoped memory for mlp_forward.1']
    #allocation6 [shape = 'u8[163840]{0}', space=vmem, size = 0x28000, scoped, tag = 'input window, operand 5, single buffered']
    %12 = vsyncpa [#allocation3], 0
    %13 = vsyncpa [#allocation5], 0
    // Predicated region
    $region2: #{mlp_forward.1} parent=1 // pred_check
      _
    $region3: #{mlp_forward.1} parent=1 // pred_check_branch
      %15 = sbr.rel (0) target = $region5
    $region4: #{mlp_forward.1} parent=1 // pred_region
      _
    $region5: #{mlp_forward.1} parent=1 // pred_fallthru
      _
    // Predicated region
    $region6: #{mlp_forward.1} parent=1 // pred_check
      _
    $region7: #{mlp_forward.1} parent=1 // pred_check_branch
      %17 = sbr.rel (0) target = $region9
    $region8: #{mlp_forward.1} parent=1 // pred_region
      %s19 = ssub.s32 10240, 10240
      %20 = vsyncadd [#allocation3], %s19
      %s21 = sshll.u32 [#allocation2], 4
      %s22 = int_to_ptr.vmem [resolvable:$true] %s21
      %27 = dma.hbm_to_vmem [thread:$0]  %s1, 10240, %s22, [#allocation3], 320, 320, 20
    $region9: #{mlp_forward.1} parent=1 // pred_fallthru
      _
    // Predicated region
    $region10: #{mlp_forward.1} parent=1 // pred_check
      _
    $region11: #{mlp_forward.1} parent=1 // pred_check_branch
      %29 = sbr.rel (0) target = $region13
    $region12: #{mlp_forward.1} parent=1 // pred_region
      _
    $region13: #{mlp_forward.1} parent=1 // pred_fallthru
      _
    // Predicated region
    $region14: #{mlp_forward.1} parent=1 // pred_check
      _
    $region15: #{mlp_forward.1} parent=1 // pred_check_branch
      %31 = sbr.rel (0) target = $region17
    $region16: #{mlp_forward.1} parent=1 // pred_region
      %s33 = ssub.s32 25600, 25600
      %34 = vsyncadd [#allocation5], %s33
      %s35 = sshll.u32 [#allocation4], 4
      %s36 = int_to_ptr.vmem [resolvable:$true] %s35
      %41 = dma.hbm_to_vmem [thread:$0]  %s3, 25600, %s36, [#allocation5], 320, 320, 20
    $region17: #{mlp_forward.1} parent=1 // pred_fallthru
      _
    // Predicated region
    $region18: #{mlp_forward.1} parent=1 // pred_check
      _
    $region19: #{mlp_forward.1} parent=1 // pred_check_branch
      %43 = sbr.rel (0) target = $region21
    $region20: #{mlp_forward.1} parent=1 // pred_region
      _
    $region21: #{mlp_forward.1} parent=1 // pred_fallthru
      _
    // Predicated region
    $region22: #{mlp_forward.1} parent=1 // pred_check
      _
    $region23: #{mlp_forward.1} parent=1 // pred_check_branch
      %45 = sbr.rel (0) target = $region25
    $region24: #{mlp_forward.1} parent=1 // pred_region
      %s47 = ssub.s32 5120, 5120
      %48 = vsyncadd [#allocation5], %s47
      %s49 = sshll.u32 [#allocation6], 4
      %s50 = int_to_ptr.vmem [resolvable:$true] %s49
      %55 = dma.hbm_to_vmem [thread:$0]  %s5, 5120, %s50, [#allocation5], 64, 64, 4
    $region25: #{mlp_forward.1} parent=1 // pred_fallthru
      _
    // Predicated region
    $region26: #{mlp_forward.1} parent=1 // pred_check
      _
    $region27: #{mlp_forward.1} parent=1 // pred_check_branch
      %57 = sbr.rel (0) target = $region29
    $region28: #{mlp_forward.1} parent=1 // pred_region
      _
    $region29: #{mlp_forward.1} parent=1 // pred_fallthru
      _
    // Predicated region
    $region30: #{mlp_forward.1} parent=1 // pred_check
      _
    $region31: #{mlp_forward.1} parent=1 // pred_check_branch
      %59 = sbr.rel (0) target = $region33
    $region32: #{mlp_forward.1} parent=1 // pred_region
      %60 = dma.done [#allocation3], 10240
    $region33: #{mlp_forward.1} parent=1 // pred_fallthru
      _
    // Predicated region
    $region34: #{mlp_forward.1} parent=1 // pred_check
      _
    $region35: #{mlp_forward.1} parent=1 // pred_check_branch
      %62 = sbr.rel (0) target = $region37
    $region36: #{mlp_forward.1} parent=1 // pred_region
      %63 = dma.done [#allocation5], 25600
    $region37: #{mlp_forward.1} parent=1 // pred_fallthru
      _
    // Predicated region
    $region38: #{mlp_forward.1} parent=1 // pred_check
      _
    $region39: #{mlp_forward.1} parent=1 // pred_check_branch
      %65 = sbr.rel (0) target = $region41
    $region40: #{mlp_forward.1} parent=1 // pred_region
      %66 = dma.done [#allocation5], 5120
    $region41: #{mlp_forward.1} parent=1 // pred_fallthru
      _
    %v68 = vld [vmem:[%s0] sm:$0xff]
    %v69 = vld [vmem:[%s0 + $0x8] sm:$0xff]
    %v70 = vld [vmem:[#allocation2] sm:$0xff]
    %v71 = vld [vmem:[#allocation2 + $0x8] sm:$0xff]
    %v72 = vld [vmem:[#allocation2 + $0x10] sm:$0xf]
    %v73 = vld [vmem:[#allocation2 + $0x14] sm:$0xff]
    %v74 = vld [vmem:[#allocation2 + $0x1c] sm:$0xff]
    %v75 = vld [vmem:[#allocation2 + $0x24] sm:$0xf]
    %v76 = vld [vmem:[#allocation2 + $0x28] sm:$0xff]
    %v77 = vld [vmem:[#allocation2 + $0x30] sm:$0xff]
    %v78 = vld [vmem:[#allocation2 + $0x38] sm:$0xf]
    %v79 = vld [vmem:[#allocation2 + $0x3c] sm:$0xff]
    %v80 = vld [vmem:[#allocation2 + $0x44] sm:$0xff]
    %v81 = vld [vmem:[#allocation2 + $0x4c] sm:$0xf]
    %v82 = vld [vmem:[#allocation2 + $0x50] sm:$0xff]
    %v83 = vld [vmem:[#allocation2 + $0x58] sm:$0xff]
    %v84 = vld [vmem:[#allocation2 + $0x60] sm:$0xf]
    %v85 = vld [vmem:[#allocation2 + $0x64] sm:$0xff]
    %v86 = vld [vmem:[#allocation2 + $0x6c] sm:$0xff]
    %v87 = vld [vmem:[#allocation2 + $0x74] sm:$0xf]
    %v88 = vld [vmem:[#allocation2 + $0x78] sm:$0xff]
    %v89 = vld [vmem:[#allocation2 + $0x80] sm:$0xff]
    %v90 = vld [vmem:[#allocation2 + $0x88] sm:$0xf]
    %v91 = vld [vmem:[#allocation2 + $0x8c] sm:$0xff]
    %v92 = vld [vmem:[#allocation2 + $0x94] sm:$0xff]
    %v93 = vld [vmem:[#allocation2 + $0x9c] sm:$0xf]
    %v94 = vld [vmem:[#allocation2 + $0xa0] sm:$0xff]
    %v95 = vld [vmem:[#allocation2 + $0xa8] sm:$0xff]
    %v96 = vld [vmem:[#allocation2 + $0xb0] sm:$0xf]
    %v97 = vld [vmem:[#allocation2 + $0xb4] sm:$0xff]
    %v98 = vld [vmem:[#allocation2 + $0xbc] sm:$0xff]
    %v99 = vld [vmem:[#allocation2 + $0xc4] sm:$0xf]
    %v100 = vld [vmem:[#allocation2 + $0xc8] sm:$0xff]
    %v101 = vld [vmem:[#allocation2 + $0xd0] sm:$0xff]
    %v102 = vld [vmem:[#allocation2 + $0xd8] sm:$0xf]
    %v103 = vld [vmem:[#allocation2 + $0xdc] sm:$0xff]
    %v104 = vld [vmem:[#allocation2 + $0xe4] sm:$0xff]
    %v105 = vld [vmem:[#allocation2 + $0xec] sm:$0xf]
    %v106 = vld [vmem:[#allocation2 + $0xf0] sm:$0xff]
    %v107 = vld [vmem:[#allocation2 + $0xf8] sm:$0xff]
    %v108 = vld [vmem:[#allocation2 + $0x100] sm:$0xf]
    %v109 = vld [vmem:[#allocation2 + $0x104] sm:$0xff]
    %v110 = vld [vmem:[#allocation2 + $0x10c] sm:$0xff]
    %v111 = vld [vmem:[#allocation2 + $0x114] sm:$0xf]
    %v112 = vld [vmem:[#allocation2 + $0x118] sm:$0xff]
    %v113 = vld [vmem:[#allocation2 + $0x120] sm:$0xff]
    %v114 = vld [vmem:[#allocation2 + $0x128] sm:$0xf]
    %v115 = vld [vmem:[#allocation2 + $0x12c] sm:$0xff]
    %v116 = vld [vmem:[#allocation2 + $0x134] sm:$0xff]
    %v117 = vld [vmem:[#allocation2 + $0x13c] sm:$0xf]
    %v118 = vld [vmem:[#allocation2 + $0x140] sm:$0xff]
    %v119 = vld [vmem:[#allocation2 + $0x148] sm:$0xff]
    %v120 = vld [vmem:[#allocation2 + $0x150] sm:$0xf]
    %v121 = vld [vmem:[#allocation2 + $0x154] sm:$0xff]
    %v122 = vld [vmem:[#allocation2 + $0x15c] sm:$0xff]
    %v123 = vld [vmem:[#allocation2 + $0x164] sm:$0xf]
    %v124 = vld [vmem:[#allocation2 + $0x168] sm:$0xff]
    %v125 = vld [vmem:[#allocation2 + $0x170] sm:$0xff]
    %v126 = vld [vmem:[#allocation2 + $0x178] sm:$0xf]
    %v127 = vld [vmem:[#allocation2 + $0x17c] sm:$0xff]
    %v128 = vld [vmem:[#allocation2 + $0x184] sm:$0xff]
    %v129 = vld [vmem:[#allocation2 + $0x18c] sm:$0xf]
    %v130 = vld [vmem:[#allocation2 + $0x190] sm:$0xff]
    %v131 = vld [vmem:[#allocation2 + $0x198] sm:$0xff]
    %v132 = vld [vmem:[#allocation2 + $0x1a0] sm:$0xf]
    %v133 = vld [vmem:[#allocation2 + $0x1a4] sm:$0xff]
    %v134 = vld [vmem:[#allocation2 + $0x1ac] sm:$0xff]
    %v135 = vld [vmem:[#allocation2 + $0x1b4] sm:$0xf]
    %v136 = vld [vmem:[#allocation2 + $0x1b8] sm:$0xff]
    %v137 = vld [vmem:[#allocation2 + $0x1c0] sm:$0xff]
    %v138 = vld [vmem:[#allocation2 + $0x1c8] sm:$0xf]
    %v139 = vld [vmem:[#allocation2 + $0x1cc] sm:$0xff]
    %v140 = vld [vmem:[#allocation2 + $0x1d4] sm:$0xff]
    %v141 = vld [vmem:[#allocation2 + $0x1dc] sm:$0xf]
    %v142 = vld [vmem:[#allocation2 + $0x1e0] sm:$0xff]
    %v143 = vld [vmem:[#allocation2 + $0x1e8] sm:$0xff]
    %v144 = vld [vmem:[#allocation2 + $0x1f0] sm:$0xf]
    %v145 = vld [vmem:[#allocation2 + $0x1f4] sm:$0xff]
    %v146 = vld [vmem:[#allocation2 + $0x1fc] sm:$0xff]
    %v147 = vld [vmem:[#allocation2 + $0x204] sm:$0xf]
    %v148 = vld [vmem:[#allocation2 + $0x208] sm:$0xff]
    %v149 = vld [vmem:[#allocation2 + $0x210] sm:$0xff]
    %v150 = vld [vmem:[#allocation2 + $0x218] sm:$0xf]
    %v151 = vld [vmem:[#allocation2 + $0x21c] sm:$0xff]
    %v152 = vld [vmem:[#allocation2 + $0x224] sm:$0xff]
    %v153 = vld [vmem:[#allocation2 + $0x22c] sm:$0xf]
    %v154 = vld [vmem:[#allocation2 + $0x230] sm:$0xff]
    %v155 = vld [vmem:[#allocation2 + $0x238] sm:$0xff]
    %v156 = vld [vmem:[#allocation2 + $0x240] sm:$0xf]
    %v157 = vld [vmem:[#allocation2 + $0x244] sm:$0xff]
    %v158 = vld [vmem:[#allocation2 + $0x24c] sm:$0xff]
    %v159 = vld [vmem:[#allocation2 + $0x254] sm:$0xf]
    %v160 = vld [vmem:[#allocation2 + $0x258] sm:$0xff]
    %v161 = vld [vmem:[#allocation2 + $0x260] sm:$0xff]
    %v162 = vld [vmem:[#allocation2 + $0x268] sm:$0xf]
    %v163 = vld [vmem:[#allocation2 + $0x26c] sm:$0xff]
    %v164 = vld [vmem:[#allocation2 + $0x274] sm:$0xff]
    %v165 = vld [vmem:[#allocation2 + $0x27c] sm:$0xf]
    %v166 = vld [vmem:[%s2] sm:$0x1f]
    %v168 = vlaneseq
    %v169 = vshrl.u32 %v168, 7
    %v170 = vsub.s32 0, %v169
    %v171 = vrot.slane %v166, %v170
    %v172 = vlaneseq
    %v173 = vshrl.u32 %v172, 7
    %v174 = vsub.s32 1, %v173
    %v175 = vrot.slane %v166, %v174
    %v176 = vlaneseq
    %v177 = vshrl.u32 %v176, 7
    %v178 = vsub.s32 2, %v177
    %v179 = vrot.slane %v166, %v178
    %v180 = vlaneseq
    %v181 = vshrl.u32 %v180, 7
    %v182 = vsub.s32 3, %v181
    %v183 = vrot.slane %v166, %v182
    %v184 = vlaneseq
    %v185 = vshrl.u32 %v184, 7
    %v186 = vsub.s32 4, %v185
    %v187 = vrot.slane %v166, %v186
    %v195 = vunpack.c.l.b16 %v68
    %v196 = vunpack.c.h.b16 %v68
    %v197 = vunpack.c.l.b16 %v69
    %v198 = vunpack.c.h.b16 %v69
    %v199 = vpack.c.b16 %v197, %v195
    %v200 = vpack.c.b16 %v198, %v196
    %v299 = vunpack.c.l.b16 %v70
    %v300 = vunpack.c.h.b16 %v70
    %v301 = vunpack.c.l.b16 %v71
    %v302 = vunpack.c.h.b16 %v71
    %v303 = vunpack.c.l.b16 %v72
    %v304 = vunpack.c.l.b16 %v73
    %v305 = vunpack.c.h.b16 %v73
    %v306 = vunpack.c.l.b16 %v74
    %v307 = vunpack.c.h.b16 %v74
    %v308 = vunpack.c.l.b16 %v75
    %v309 = vunpack.c.l.b16 %v76
    %v310 = vunpack.c.h.b16 %v76
    %v311 = vunpack.c.l.b16 %v77
    %v312 = vunpack.c.h.b16 %v77
    %v313 = vunpack.c.l.b16 %v78
    %v314 = vunpack.c.l.b16 %v79
    %v315 = vunpack.c.h.b16 %v79
    %v316 = vunpack.c.l.b16 %v80
    %v317 = vunpack.c.h.b16 %v80
    %v318 = vunpack.c.l.b16 %v81
    %v319 = vunpack.c.l.b16 %v82
    %v320 = vunpack.c.h.b16 %v82
    %v321 = vunpack.c.l.b16 %v83
    %v322 = vunpack.c.h.b16 %v83
    %v323 = vunpack.c.l.b16 %v84
    %v324 = vunpack.c.l.b16 %v85
    %v325 = vunpack.c.h.b16 %v85
    %v326 = vunpack.c.l.b16 %v86
    %v327 = vunpack.c.h.b16 %v86
    %v328 = vunpack.c.l.b16 %v87
    %v329 = vunpack.c.l.b16 %v88
    %v330 = vunpack.c.h.b16 %v88
    %v331 = vunpack.c.l.b16 %v89
    %v332 = vunpack.c.h.b16 %v89
    %v333 = vunpack.c.l.b16 %v90
    %v334 = vunpack.c.l.b16 %v91
    %v335 = vunpack.c.h.b16 %v91
    %v336 = vunpack.c.l.b16 %v92
    %v337 = vunpack.c.h.b16 %v92
    %v338 = vunpack.c.l.b16 %v93
    %v339 = vunpack.c.l.b16 %v94
    %v340 = vunpack.c.h.b16 %v94
    %v341 = vunpack.c.l.b16 %v95
    %v342 = vunpack.c.h.b16 %v95
    %v343 = vunpack.c.l.b16 %v96
    %v344 = vunpack.c.l.b16 %v97
    %v345 = vunpack.c.h.b16 %v97
    %v346 = vunpack.c.l.b16 %v98
    %v347 = vunpack.c.h.b16 %v98
    %v348 = vunpack.c.l.b16 %v99
    %v349 = vunpack.c.l.b16 %v100
    %v350 = vunpack.c.h.b16 %v100
    %v351 = vunpack.c.l.b16 %v101
    %v352 = vunpack.c.h.b16 %v101
    %v353 = vunpack.c.l.b16 %v102
    %v354 = vunpack.c.l.b16 %v103
    %v355 = vunpack.c.h.b16 %v103
    %v356 = vunpack.c.l.b16 %v104
    %v357 = vunpack.c.h.b16 %v104
    %v358 = vunpack.c.l.b16 %v105
    %v359 = vunpack.c.l.b16 %v106
    %v360 = vunpack.c.h.b16 %v106
    %v361 = vunpack.c.l.b16 %v107
    %v362 = vunpack.c.h.b16 %v107
    %v363 = vunpack.c.l.b16 %v108
    %v364 = vunpack.c.l.b16 %v109
    %v365 = vunpack.c.h.b16 %v109
    %v366 = vunpack.c.l.b16 %v110
    %v367 = vunpack.c.h.b16 %v110
    %v368 = vunpack.c.l.b16 %v111
    %v369 = vunpack.c.l.b16 %v112
    %v370 = vunpack.c.h.b16 %v112
    %v371 = vunpack.c.l.b16 %v113
    %v372 = vunpack.c.h.b16 %v113
    %v373 = vunpack.c.l.b16 %v114
    %v374 = vunpack.c.l.b16 %v115
    %v375 = vunpack.c.h.b16 %v115
    %v376 = vunpack.c.l.b16 %v116
    %v377 = vunpack.c.h.b16 %v116
    %v378 = vunpack.c.l.b16 %v117
    %v379 = vunpack.c.l.b16 %v118
    %v380 = vunpack.c.h.b16 %v118
    %v381 = vunpack.c.l.b16 %v119
    %v382 = vunpack.c.h.b16 %v119
    %v383 = vunpack.c.l.b16 %v120
    %v384 = vunpack.c.l.b16 %v121
    %v385 = vunpack.c.h.b16 %v121
    %v386 = vunpack.c.l.b16 %v122
    %v387 = vunpack.c.h.b16 %v122
    %v388 = vunpack.c.l.b16 %v123
    %v389 = vunpack.c.l.b16 %v124
    %v390 = vunpack.c.h.b16 %v124
    %v391 = vunpack.c.l.b16 %v125
    %v392 = vunpack.c.h.b16 %v125
    %v393 = vunpack.c.l.b16 %v126
    %v394 = vunpack.c.l.b16 %v127
    %v395 = vunpack.c.h.b16 %v127
    %v396 = vunpack.c.l.b16 %v128
    %v397 = vunpack.c.h.b16 %v128
    %v398 = vunpack.c.l.b16 %v129
    %v399 = vunpack.c.l.b16 %v130
    %v400 = vunpack.c.h.b16 %v130
    %v401 = vunpack.c.l.b16 %v131
    %v402 = vunpack.c.h.b16 %v131
    %v403 = vunpack.c.l.b16 %v132
    %v404 = vunpack.c.l.b16 %v133
    %v405 = vunpack.c.h.b16 %v133
    %v406 = vunpack.c.l.b16 %v134
    %v407 = vunpack.c.h.b16 %v134
    %v408 = vunpack.c.l.b16 %v135
    %v409 = vunpack.c.l.b16 %v136
    %v410 = vunpack.c.h.b16 %v136
    %v411 = vunpack.c.l.b16 %v137
    %v412 = vunpack.c.h.b16 %v137
    %v413 = vunpack.c.l.b16 %v138
    %v414 = vunpack.c.l.b16 %v139
    %v415 = vunpack.c.h.b16 %v139
    %v416 = vunpack.c.l.b16 %v140
    %v417 = vunpack.c.h.b16 %v140
    %v418 = vunpack.c.l.b16 %v141
    %v419 = vunpack.c.l.b16 %v142
    %v420 = vunpack.c.h.b16 %v142
    %v421 = vunpack.c.l.b16 %v143
    %v422 = vunpack.c.h.b16 %v143
    %v423 = vunpack.c.l.b16 %v144
    %v424 = vunpack.c.l.b16 %v145
    %v425 = vunpack.c.h.b16 %v145
    %v426 = vunpack.c.l.b16 %v146
    %v427 = vunpack.c.h.b16 %v146
    %v428 = vunpack.c.l.b16 %v147
    %v429 = vunpack.c.l.b16 %v148
    %v430 = vunpack.c.h.b16 %v148
    %v431 = vunpack.c.l.b16 %v149
    %v432 = vunpack.c.h.b16 %v149
    %v433 = vunpack.c.l.b16 %v150
    %v434 = vunpack.c.l.b16 %v151
    %v435 = vunpack.c.h.b16 %v151
    %v436 = vunpack.c.l.b16 %v152
    %v437 = vunpack.c.h.b16 %v152
    %v438 = vunpack.c.l.b16 %v153
    %v439 = vunpack.c.l.b16 %v154
    %v440 = vunpack.c.h.b16 %v154
    %v441 = vunpack.c.l.b16 %v155
    %v442 = vunpack.c.h.b16 %v155
    %v443 = vunpack.c.l.b16 %v156
    %v444 = vunpack.c.l.b16 %v157
    %v445 = vunpack.c.h.b16 %v157
    %v446 = vunpack.c.l.b16 %v158
    %v447 = vunpack.c.h.b16 %v158
    %v448 = vunpack.c.l.b16 %v159
    %v449 = vunpack.c.l.b16 %v160
    %v450 = vunpack.c.h.b16 %v160
    %v451 = vunpack.c.l.b16 %v161
    %v452 = vunpack.c.h.b16 %v161
    %v453 = vunpack.c.l.b16 %v162
    %v454 = vunpack.c.l.b16 %v163
    %v455 = vunpack.c.h.b16 %v163
    %v456 = vunpack.c.l.b16 %v164
    %v457 = vunpack.c.h.b16 %v164
    %v458 = vunpack.c.l.b16 %v165
    %v459 = vpack.c.b16 %v304, %v299
    %v460 = vpack.c.b16 %v305, %v300
    %v461 = vpack.c.b16 %v306, %v301
    %v462 = vpack.c.b16 %v307, %v302
    %v463 = vpack.c.b16 %v308, %v303
    %v464 = vpack.c.b16 %v314, %v309
    %v465 = vpack.c.b16 %v315, %v310
    %v466 = vpack.c.b16 %v316, %v311
    %v467 = vpack.c.b16 %v317, %v312
    %v468 = vpack.c.b16 %v318, %v313
    %v469 = vpack.c.b16 %v324, %v319
    %v470 = vpack.c.b16 %v325, %v320
    %v471 = vpack.c.b16 %v326, %v321
    %v472 = vpack.c.b16 %v327, %v322
    %v473 = vpack.c.b16 %v328, %v323
    %v474 = vpack.c.b16 %v334, %v329
    %v475 = vpack.c.b16 %v335, %v330
    %v476 = vpack.c.b16 %v336, %v331
    %v477 = vpack.c.b16 %v337, %v332
    %v478 = vpack.c.b16 %v338, %v333
    %v479 = vpack.c.b16 %v344, %v339
    %v480 = vpack.c.b16 %v345, %v340
    %v481 = vpack.c.b16 %v346, %v341
    %v482 = vpack.c.b16 %v347, %v342
    %v483 = vpack.c.b16 %v348, %v343
    %v484 = vpack.c.b16 %v354, %v349
    %v485 = vpack.c.b16 %v355, %v350
    %v486 = vpack.c.b16 %v356, %v351
    %v487 = vpack.c.b16 %v357, %v352
    %v488 = vpack.c.b16 %v358, %v353
    %v489 = vpack.c.b16 %v364, %v359
    %v490 = vpack.c.b16 %v365, %v360
    %v491 = vpack.c.b16 %v366, %v361
    %v492 = vpack.c.b16 %v367, %v362
    %v493 = vpack.c.b16 %v368, %v363
    %v494 = vpack.c.b16 %v374, %v369
    %v495 = vpack.c.b16 %v375, %v370
    %v496 = vpack.c.b16 %v376, %v371
    %v497 = vpack.c.b16 %v377, %v372
    %v498 = vpack.c.b16 %v378, %v373
    %v499 = vpack.c.b16 %v384, %v379
    %v500 = vpack.c.b16 %v385, %v380
    %v501 = vpack.c.b16 %v386, %v381
    %v502 = vpack.c.b16 %v387, %v382
    %v503 = vpack.c.b16 %v388, %v383
    %v504 = vpack.c.b16 %v394, %v389
    %v505 = vpack.c.b16 %v395, %v390
    %v506 = vpack.c.b16 %v396, %v391
    %v507 = vpack.c.b16 %v397, %v392
    %v508 = vpack.c.b16 %v398, %v393
    %v509 = vpack.c.b16 %v404, %v399
    %v510 = vpack.c.b16 %v405, %v400
    %v511 = vpack.c.b16 %v406, %v401
    %v512 = vpack.c.b16 %v407, %v402
    %v513 = vpack.c.b16 %v408, %v403
    %v514 = vpack.c.b16 %v414, %v409
    %v515 = vpack.c.b16 %v415, %v410
    %v516 = vpack.c.b16 %v416, %v411
    %v517 = vpack.c.b16 %v417, %v412
    %v518 = vpack.c.b16 %v418, %v413
    %v519 = vpack.c.b16 %v424, %v419
    %v520 = vpack.c.b16 %v425, %v420
    %v521 = vpack.c.b16 %v426, %v421
    %v522 = vpack.c.b16 %v427, %v422
    %v523 = vpack.c.b16 %v428, %v423
    %v524 = vpack.c.b16 %v434, %v429
    %v525 = vpack.c.b16 %v435, %v430
    %v526 = vpack.c.b16 %v436, %v431
    %v527 = vpack.c.b16 %v437, %v432
    %v528 = vpack.c.b16 %v438, %v433
    %v529 = vpack.c.b16 %v444, %v439
    %v530 = vpack.c.b16 %v445, %v440
    %v531 = vpack.c.b16 %v446, %v441
    %v532 = vpack.c.b16 %v447, %v442
    %v533 = vpack.c.b16 %v448, %v443
    %v534 = vpack.c.b16 %v454, %v449
    %v535 = vpack.c.b16 %v455, %v450
    %v536 = vpack.c.b16 %v456, %v451
    %v537 = vpack.c.b16 %v457, %v452
    %v538 = vpack.c.b16 %v458, %v453
    %619 = vmatprep.subr.bf16.mxu0 %v460
    %620 = vmatpush1.bf16.msra.mxu0 %v459
    %621 = vmatprep.subr.bf16.mxu0 %v465
    %622 = vmatpush1.bf16.msra.mxu0 %v464
    %623 = vmatprep.subr.bf16.mxu0 %v470
    %624 = vmatpush1.bf16.msra.mxu0 %v469
    %625 = vmatprep.subr.bf16.mxu0 %v475
    %626 = vmatpush1.bf16.msra.mxu0 %v474
    %627 = vmatprep.subr.bf16.mxu0 %v480
    %628 = vmatpush1.bf16.msra.mxu0 %v479
    %629 = vmatprep.subr.bf16.mxu0 %v485
    %630 = vmatpush1.bf16.msra.mxu0 %v484
    %631 = vmatprep.subr.bf16.mxu0 %v490
    %632 = vmatpush1.bf16.msra.mxu0 %v489
    %633 = vmatprep.subr.bf16.mxu0 %v495
    %634 = vmatpush1.bf16.msra.mxu0 %v494
    %635 = vmatprep.subr.bf16.mxu0 %v500
    %636 = vmatpush1.bf16.msra.mxu0 %v499
    %637 = vmatprep.subr.bf16.mxu0 %v505
    %638 = vmatpush1.bf16.msra.mxu0 %v504
    %639 = vmatprep.subr.bf16.mxu0 %v510
    %640 = vmatpush1.bf16.msra.mxu0 %v509
    %641 = vmatprep.subr.bf16.mxu0 %v515
    %642 = vmatpush1.bf16.msra.mxu0 %v514
    %643 = vmatprep.subr.bf16.mxu0 %v520
    %644 = vmatpush1.bf16.msra.mxu0 %v519
    %645 = vmatprep.subr.bf16.mxu0 %v525
    %646 = vmatpush1.bf16.msra.mxu0 %v524
    %647 = vmatprep.subr.bf16.mxu0 %v530
    %648 = vmatpush1.bf16.msra.mxu0 %v529
    %649 = vmatprep.subr.bf16.mxu0 %v535
    %650 = vmatpush1.bf16.msra.mxu0 %v534
    %651 = vmatprep.mubr.bf16.mxu0 %v200
    %652 = vmatmul.mubr.bf16.gmra.mrb[0].mxu0 %v199
    %v653 = vpop.f32.mrb[0].mxu0
    %v654 = vadd.f32 %v171, %v653
    %v655 = vpop.f32.mrb[0].mxu0
    %v656 = vadd.f32 %v175, %v655
    %v657 = vpop.f32.mrb[0].mxu0
    %v658 = vadd.f32 %v171, %v657
    %v659 = vpop.f32.mrb[0].mxu0
    %v660 = vadd.f32 %v175, %v659
    %661 = vdwg.mxu0
    %662 = vmatprep.subr.bf16.mxu0 %v462
    %663 = vmatpush1.bf16.msra.mxu0 %v461
    %664 = vmatprep.subr.bf16.mxu0 %v467
    %665 = vmatpush1.bf16.msra.mxu0 %v466
    %666 = vmatprep.subr.bf16.mxu0 %v472
    %667 = vmatpush1.bf16.msra.mxu0 %v471
    %668 = vmatprep.subr.bf16.mxu0 %v477
    %669 = vmatpush1.bf16.msra.mxu0 %v476
    %670 = vmatprep.subr.bf16.mxu0 %v482
    %671 = vmatpush1.bf16.msra.mxu0 %v481
    %672 = vmatprep.subr.bf16.mxu0 %v487
    %673 = vmatpush1.bf16.msra.mxu0 %v486
    %674 = vmatprep.subr.bf16.mxu0 %v492
    %675 = vmatpush1.bf16.msra.mxu0 %v491
    %676 = vmatprep.subr.bf16.mxu0 %v497
    %677 = vmatpush1.bf16.msra.mxu0 %v496
    %678 = vmatprep.subr.bf16.mxu0 %v502
    %679 = vmatpush1.bf16.msra.mxu0 %v501
    %680 = vmatprep.subr.bf16.mxu0 %v507
    %681 = vmatpush1.bf16.msra.mxu0 %v506
    %682 = vmatprep.subr.bf16.mxu0 %v512
    %683 = vmatpush1.bf16.msra.mxu0 %v511
    %684 = vmatprep.subr.bf16.mxu0 %v517
    %685 = vmatpush1.bf16.msra.mxu0 %v516
    %686 = vmatprep.subr.bf16.mxu0 %v522
    %687 = vmatpush1.bf16.msra.mxu0 %v521
    %688 = vmatprep.subr.bf16.mxu0 %v527
    %689 = vmatpush1.bf16.msra.mxu0 %v526
    %690 = vmatprep.subr.bf16.mxu0 %v532
    %691 = vmatpush1.bf16.msra.mxu0 %v531
    %692 = vmatprep.subr.bf16.mxu0 %v537
    %693 = vmatpush1.bf16.msra.mxu0 %v536
    %694 = vmatprep.mubr.bf16.mxu0 %v200
    %695 = vmatmul.mubr.bf16.gmra.mrb[0].mxu0 %v199
    %v696 = vpop.f32.mrb[0].mxu0
    %v697 = vadd.f32 %v179, %v696
    %v698 = vpop.f32.mrb[0].mxu0
    %v699 = vadd.f32 %v183, %v698
    %v700 = vpop.f32.mrb[0].mxu0
    %v701 = vadd.f32 %v179, %v700
    %v702 = vpop.f32.mrb[0].mxu0
    %v703 = vadd.f32 %v183, %v702
    %704 = vdwg.mxu0
    %705 = vmatprep.subr.bf16.mxu0 0
    %706 = vmatpush1.bf16.msra.mxu0 %v463
    %707 = vmatprep.subr.bf16.mxu0 0
    %708 = vmatpush1.bf16.msra.mxu0 %v468
    %709 = vmatprep.subr.bf16.mxu0 0
    %710 = vmatpush1.bf16.msra.mxu0 %v473
    %711 = vmatprep.subr.bf16.mxu0 0
    %712 = vmatpush1.bf16.msra.mxu0 %v478
    %713 = vmatprep.subr.bf16.mxu0 0
    %714 = vmatpush1.bf16.msra.mxu0 %v483
    %715 = vmatprep.subr.bf16.mxu0 0
    %716 = vmatpush1.bf16.msra.mxu0 %v488
    %717 = vmatprep.subr.bf16.mxu0 0
    %718 = vmatpush1.bf16.msra.mxu0 %v493
    %719 = vmatprep.subr.bf16.mxu0 0
    %720 = vmatpush1.bf16.msra.mxu0 %v498
    %721 = vmatprep.subr.bf16.mxu0 0
    %722 = vmatpush1.bf16.msra.mxu0 %v503
    %723 = vmatprep.subr.bf16.mxu0 0
    %724 = vmatpush1.bf16.msra.mxu0 %v508
    %725 = vmatprep.subr.bf16.mxu0 0
    %726 = vmatpush1.bf16.msra.mxu0 %v513
    %727 = vmatprep.subr.bf16.mxu0 0
    %728 = vmatpush1.bf16.msra.mxu0 %v518
    %729 = vmatprep.subr.bf16.mxu0 0
    %730 = vmatpush1.bf16.msra.mxu0 %v523
    %731 = vmatprep.subr.bf16.mxu0 0
    %732 = vmatpush1.bf16.msra.mxu0 %v528
    %733 = vmatprep.subr.bf16.mxu0 0
    %734 = vmatpush1.bf16.msra.mxu0 %v533
    %735 = vmatprep.subr.bf16.mxu0 0
    %736 = vmatpush1.bf16.msra.mxu0 %v538
    %737 = vmatprep.mubr.bf16.mxu0 %v200
    %738 = vmatmul.mubr.bf16.gmra.mrb[0].mxu0 %v199
    %v739 = vpop.f32.mrb[0].mxu0
    %v740 = vadd.f32 %v187, %v739
    %v741 = vpop.f32.mrb[0].mxu0
    %v742 = vpop.f32.mrb[0].mxu0
    %v743 = vadd.f32 %v187, %v742
    %v744 = vpop.f32.mrb[0].mxu0
    %745 = vdwg.mxu0
    %v746 = vmax.f32 %v654, 0.0
    %v747 = vmax.f32 %v656, 0.0
    %v748 = vmax.f32 %v697, 0.0
    %v749 = vmax.f32 %v699, 0.0
    %v750 = vmax.f32 %v740, 0.0
    %v751 = vmax.f32 %v658, 0.0
    %v752 = vmax.f32 %v660, 0.0
    %v753 = vmax.f32 %v701, 0.0
    %v754 = vmax.f32 %v703, 0.0
    %v755 = vmax.f32 %v743, 0.0
    %v756 = vpack.c.bf16 %v751, %v746
    %v757 = vpack.c.bf16 %v752, %v747
    %v758 = vpack.c.bf16 %v753, %v748
    %v759 = vpack.c.bf16 %v754, %v749
    %v760 = vpack.c.bf16 %v755, %v750
    %v761 = vld [vmem:[#allocation4] sm:$0xff]
    %v762 = vld [vmem:[#allocation4 + $0x8] sm:$0xff]
    %v763 = vld [vmem:[#allocation4 + $0x10] sm:$0xf]
    %v764 = vld [vmem:[#allocation4 + $0x14] sm:$0xff]
    %v765 = vld [vmem:[#allocation4 + $0x1c] sm:$0xff]
    %v766 = vld [vmem:[#allocation4 + $0x24] sm:$0xf]
    %v767 = vld [vmem:[#allocation4 + $0x28] sm:$0xff]
    %v768 = vld [vmem:[#allocation4 + $0x30] sm:$0xff]
    %v769 = vld [vmem:[#allocation4 + $0x38] sm:$0xf]
    %v770 = vld [vmem:[#allocation4 + $0x3c] sm:$0xff]
    %v771 = vld [vmem:[#allocation4 + $0x44] sm:$0xff]
    %v772 = vld [vmem:[#allocation4 + $0x4c] sm:$0xf]
    %v773 = vld [vmem:[#allocation4 + $0x50] sm:$0xff]
    %v774 = vld [vmem:[#allocation4 + $0x58] sm:$0xff]
    %v775 = vld [vmem:[#allocation4 + $0x60] sm:$0xf]
    %v776 = vld [vmem:[#allocation4 + $0x64] sm:$0xff]
    %v777 = vld [vmem:[#allocation4 + $0x6c] sm:$0xff]
    %v778 = vld [vmem:[#allocation4 + $0x74] sm:$0xf]
    %v779 = vld [vmem:[#allocation4 + $0x78] sm:$0xff]
    %v780 = vld [vmem:[#allocation4 + $0x80] sm:$0xff]
    %v781 = vld [vmem:[#allocation4 + $0x88] sm:$0xf]
    %v782 = vld [vmem:[#allocation4 + $0x8c] sm:$0xff]
    %v783 = vld [vmem:[#allocation4 + $0x94] sm:$0xff]
    %v784 = vld [vmem:[#allocation4 + $0x9c] sm:$0xf]
    %v785 = vld [vmem:[#allocation4 + $0xa0] sm:$0xff]
    %v786 = vld [vmem:[#allocation4 + $0xa8] sm:$0xff]
    %v787 = vld [vmem:[#allocation4 + $0xb0] sm:$0xf]
    %v788 = vld [vmem:[#allocation4 + $0xb4] sm:$0xff]
    %v789 = vld [vmem:[#allocation4 + $0xbc] sm:$0xff]
    %v790 = vld [vmem:[#allocation4 + $0xc4] sm:$0xf]
    %v791 = vld [vmem:[#allocation4 + $0xc8] sm:$0xff]
    %v792 = vld [vmem:[#allocation4 + $0xd0] sm:$0xff]
    %v793 = vld [vmem:[#allocation4 + $0xd8] sm:$0xf]
    %v794 = vld [vmem:[#allocation4 + $0xdc] sm:$0xff]
    %v795 = vld [vmem:[#allocation4 + $0xe4] sm:$0xff]
    %v796 = vld [vmem:[#allocation4 + $0xec] sm:$0xf]
    %v797 = vld [vmem:[#allocation4 + $0xf0] sm:$0xff]
    %v798 = vld [vmem:[#allocation4 + $0xf8] sm:$0xff]
    %v799 = vld [vmem:[#allocation4 + $0x100] sm:$0xf]
    %v800 = vld [vmem:[#allocation4 + $0x104] sm:$0xff]
    %v801 = vld [vmem:[#allocation4 + $0x10c] sm:$0xff]
    %v802 = vld [vmem:[#allocation4 + $0x114] sm:$0xf]
    %v803 = vld [vmem:[#allocation4 + $0x118] sm:$0xff]
    %v804 = vld [vmem:[#allocation4 + $0x120] sm:$0xff]
    %v805 = vld [vmem:[#allocation4 + $0x128] sm:$0xf]
    %v806 = vld [vmem:[#allocation4 + $0x12c] sm:$0xff]
    %v807 = vld [vmem:[#allocation4 + $0x134] sm:$0xff]
    %v808 = vld [vmem:[#allocation4 + $0x13c] sm:$0xf]
    %v809 = vld [vmem:[#allocation4 + $0x140] sm:$0xff]
    %v810 = vld [vmem:[#allocation4 + $0x148] sm:$0xff]
    %v811 = vld [vmem:[#allocation4 + $0x150] sm:$0xf]
    %v812 = vld [vmem:[#allocation4 + $0x154] sm:$0xff]
    %v813 = vld [vmem:[#allocation4 + $0x15c] sm:$0xff]
    %v814 = vld [vmem:[#allocation4 + $0x164] sm:$0xf]
    %v815 = vld [vmem:[#allocation4 + $0x168] sm:$0xff]
    %v816 = vld [vmem:[#allocation4 + $0x170] sm:$0xff]
    %v817 = vld [vmem:[#allocation4 + $0x178] sm:$0xf]
    %v818 = vld [vmem:[#allocation4 + $0x17c] sm:$0xff]
    %v819 = vld [vmem:[#allocation4 + $0x184] sm:$0xff]
    %v820 = vld [vmem:[#allocation4 + $0x18c] sm:$0xf]
    %v821 = vld [vmem:[#allocation4 + $0x190] sm:$0xff]
    %v822 = vld [vmem:[#allocation4 + $0x198] sm:$0xff]
    %v823 = vld [vmem:[#allocation4 + $0x1a0] sm:$0xf]
    %v824 = vld [vmem:[#allocation4 + $0x1a4] sm:$0xff]
    %v825 = vld [vmem:[#allocation4 + $0x1ac] sm:$0xff]
    %v826 = vld [vmem:[#allocation4 + $0x1b4] sm:$0xf]
    %v827 = vld [vmem:[#allocation4 + $0x1b8] sm:$0xff]
    %v828 = vld [vmem:[#allocation4 + $0x1c0] sm:$0xff]
    %v829 = vld [vmem:[#allocation4 + $0x1c8] sm:$0xf]
    %v830 = vld [vmem:[#allocation4 + $0x1cc] sm:$0xff]
    %v831 = vld [vmem:[#allocation4 + $0x1d4] sm:$0xff]
    %v832 = vld [vmem:[#allocation4 + $0x1dc] sm:$0xf]
    %v833 = vld [vmem:[#allocation4 + $0x1e0] sm:$0xff]
    %v834 = vld [vmem:[#allocation4 + $0x1e8] sm:$0xff]
    %v835 = vld [vmem:[#allocation4 + $0x1f0] sm:$0xf]
    %v836 = vld [vmem:[#allocation4 + $0x1f4] sm:$0xff]
    %v837 = vld [vmem:[#allocation4 + $0x1fc] sm:$0xff]
    %v838 = vld [vmem:[#allocation4 + $0x204] sm:$0xf]
    %v839 = vld [vmem:[#allocation4 + $0x208] sm:$0xff]
    %v840 = vld [vmem:[#allocation4 + $0x210] sm:$0xff]
    %v841 = vld [vmem:[#allocation4 + $0x218] sm:$0xf]
    %v842 = vld [vmem:[#allocation4 + $0x21c] sm:$0xff]
    %v843 = vld [vmem:[#allocation4 + $0x224] sm:$0xff]
    %v844 = vld [vmem:[#allocation4 + $0x22c] sm:$0xf]
    %v845 = vld [vmem:[#allocation4 + $0x230] sm:$0xff]
    %v846 = vld [vmem:[#allocation4 + $0x238] sm:$0xff]
    %v847 = vld [vmem:[#allocation4 + $0x240] sm:$0xf]
    %v848 = vld [vmem:[#allocation4 + $0x244] sm:$0xff]
    %v849 = vld [vmem:[#allocation4 + $0x24c] sm:$0xff]
    %v850 = vld [vmem:[#allocation4 + $0x254] sm:$0xf]
    %v851 = vld [vmem:[#allocation4 + $0x258] sm:$0xff]
    %v852 = vld [vmem:[#allocation4 + $0x260] sm:$0xff]
    %v853 = vld [vmem:[#allocation4 + $0x268] sm:$0xf]
    %v854 = vld [vmem:[#allocation4 + $0x26c] sm:$0xff]
    %v855 = vld [vmem:[#allocation4 + $0x274] sm:$0xff]
    %v856 = vld [vmem:[#allocation4 + $0x27c] sm:$0xf]
    %v857 = vld [vmem:[#allocation4 + $0x280] sm:$0xff]
    %v858 = vld [vmem:[#allocation4 + $0x288] sm:$0xff]
    %v859 = vld [vmem:[#allocation4 + $0x290] sm:$0xf]
    %v860 = vld [vmem:[#allocation4 + $0x294] sm:$0xff]
    %v861 = vld [vmem:[#allocation4 + $0x29c] sm:$0xff]
    %v862 = vld [vmem:[#allocation4 + $0x2a4] sm:$0xf]
    %v863 = vld [vmem:[#allocation4 + $0x2a8] sm:$0xff]
    %v864 = vld [vmem:[#allocation4 + $0x2b0] sm:$0xff]
    %v865 = vld [vmem:[#allocation4 + $0x2b8] sm:$0xf]
    %v866 = vld [vmem:[#allocation4 + $0x2bc] sm:$0xff]
    %v867 = vld [vmem:[#allocation4 + $0x2c4] sm:$0xff]
    %v868 = vld [vmem:[#allocation4 + $0x2cc] sm:$0xf]
    %v869 = vld [vmem:[#allocation4 + $0x2d0] sm:$0xff]
    %v870 = vld [vmem:[#allocation4 + $0x2d8] sm:$0xff]
    %v871 = vld [vmem:[#allocation4 + $0x2e0] sm:$0xf]
    %v872 = vld [vmem:[#allocation4 + $0x2e4] sm:$0xff]
    %v873 = vld [vmem:[#allocation4 + $0x2ec] sm:$0xff]
    %v874 = vld [vmem:[#allocation4 + $0x2f4] sm:$0xf]
    %v875 = vld [vmem:[#allocation4 + $0x2f8] sm:$0xff]
    %v876 = vld [vmem:[#allocation4 + $0x300] sm:$0xff]
    %v877 = vld [vmem:[#allocation4 + $0x308] sm:$0xf]
    %v878 = vld [vmem:[#allocation4 + $0x30c] sm:$0xff]
    %v879 = vld [vmem:[#allocation4 + $0x314] sm:$0xff]
    %v880 = vld [vmem:[#allocation4 + $0x31c] sm:$0xf]
    %v881 = vld [vmem:[#allocation4 + $0x320] sm:$0xff]
    %v882 = vld [vmem:[#allocation4 + $0x328] sm:$0xff]
    %v883 = vld [vmem:[#allocation4 + $0x330] sm:$0xf]
    %v884 = vld [vmem:[#allocation4 + $0x334] sm:$0xff]
    %v885 = vld [vmem:[#allocation4 + $0x33c] sm:$0xff]
    %v886 = vld [vmem:[#allocation4 + $0x344] sm:$0xf]
    %v887 = vld [vmem:[#allocation4 + $0x348] sm:$0xff]
    %v888 = vld [vmem:[#allocation4 + $0x350] sm:$0xff]
    %v889 = vld [vmem:[#allocation4 + $0x358] sm:$0xf]
    %v890 = vld [vmem:[#allocation4 + $0x35c] sm:$0xff]
    %v891 = vld [vmem:[#allocation4 + $0x364] sm:$0xff]
    %v892 = vld [vmem:[#allocation4 + $0x36c] sm:$0xf]
    %v893 = vld [vmem:[#allocation4 + $0x370] sm:$0xff]
    %v894 = vld [vmem:[#allocation4 + $0x378] sm:$0xff]
    %v895 = vld [vmem:[#allocation4 + $0x380] sm:$0xf]
    %v896 = vld [vmem:[#allocation4 + $0x384] sm:$0xff]
    %v897 = vld [vmem:[#allocation4 + $0x38c] sm:$0xff]
    %v898 = vld [vmem:[#allocation4 + $0x394] sm:$0xf]
    %v899 = vld [vmem:[#allocation4 + $0x398] sm:$0xff]
    %v900 = vld [vmem:[#allocation4 + $0x3a0] sm:$0xff]
    %v901 = vld [vmem:[#allocation4 + $0x3a8] sm:$0xf]
    %v902 = vld [vmem:[#allocation4 + $0x3ac] sm:$0xff]
    %v903 = vld [vmem:[#allocation4 + $0x3b4] sm:$0xff]
    %v904 = vld [vmem:[#allocation4 + $0x3bc] sm:$0xf]
    %v905 = vld [vmem:[#allocation4 + $0x3c0] sm:$0xff]
    %v906 = vld [vmem:[#allocation4 + $0x3c8] sm:$0xff]
    %v907 = vld [vmem:[#allocation4 + $0x3d0] sm:$0xf]
    %v908 = vld [vmem:[#allocation4 + $0x3d4] sm:$0xff]
    %v909 = vld [vmem:[#allocation4 + $0x3dc] sm:$0xff]
    %v910 = vld [vmem:[#allocation4 + $0x3e4] sm:$0xf]
    %v911 = vld [vmem:[#allocation4 + $0x3e8] sm:$0xff]
    %v912 = vld [vmem:[#allocation4 + $0x3f0] sm:$0xff]
    %v913 = vld [vmem:[#allocation4 + $0x3f8] sm:$0xf]
    %v914 = vld [vmem:[#allocation4 + $0x3fc] sm:$0xff]
    %v915 = vld [vmem:[#allocation4 + $0x404] sm:$0xff]
    %v916 = vld [vmem:[#allocation4 + $0x40c] sm:$0xf]
    %v917 = vld [vmem:[#allocation4 + $0x410] sm:$0xff]
    %v918 = vld [vmem:[#allocation4 + $0x418] sm:$0xff]
    %v919 = vld [vmem:[#allocation4 + $0x420] sm:$0xf]
    %v920 = vld [vmem:[#allocation4 + $0x424] sm:$0xff]
    %v921 = vld [vmem:[#allocation4 + $0x42c] sm:$0xff]
    %v922 = vld [vmem:[#allocation4 + $0x434] sm:$0xf]
    %v923 = vld [vmem:[#allocation4 + $0x438] sm:$0xff]
    %v924 = vld [vmem:[#allocation4 + $0x440] sm:$0xff]
    %v925 = vld [vmem:[#allocation4 + $0x448] sm:$0xf]
    %v926 = vld [vmem:[#allocation4 + $0x44c] sm:$0xff]
    %v927 = vld [vmem:[#allocation4 + $0x454] sm:$0xff]
    %v928 = vld [vmem:[#allocation4 + $0x45c] sm:$0xf]
    %v929 = vld [vmem:[#allocation4 + $0x460] sm:$0xff]
    %v930 = vld [vmem:[#allocation4 + $0x468] sm:$0xff]
    %v931 = vld [vmem:[#allocation4 + $0x470] sm:$0xf]
    %v932 = vld [vmem:[#allocation4 + $0x474] sm:$0xff]
    %v933 = vld [vmem:[#allocation4 + $0x47c] sm:$0xff]
    %v934 = vld [vmem:[#allocation4 + $0x484] sm:$0xf]
    %v935 = vld [vmem:[#allocation4 + $0x488] sm:$0xff]
    %v936 = vld [vmem:[#allocation4 + $0x490] sm:$0xff]
    %v937 = vld [vmem:[#allocation4 + $0x498] sm:$0xf]
    %v938 = vld [vmem:[#allocation4 + $0x49c] sm:$0xff]
    %v939 = vld [vmem:[#allocation4 + $0x4a4] sm:$0xff]
    %v940 = vld [vmem:[#allocation4 + $0x4ac] sm:$0xf]
    %v941 = vld [vmem:[#allocation4 + $0x4b0] sm:$0xff]
    %v942 = vld [vmem:[#allocation4 + $0x4b8] sm:$0xff]
    %v943 = vld [vmem:[#allocation4 + $0x4c0] sm:$0xf]
    %v944 = vld [vmem:[#allocation4 + $0x4c4] sm:$0xff]
    %v945 = vld [vmem:[#allocation4 + $0x4cc] sm:$0xff]
    %v946 = vld [vmem:[#allocation4 + $0x4d4] sm:$0xf]
    %v947 = vld [vmem:[#allocation4 + $0x4d8] sm:$0xff]
    %v948 = vld [vmem:[#allocation4 + $0x4e0] sm:$0xff]
    %v949 = vld [vmem:[#allocation4 + $0x4e8] sm:$0xf]
    %v950 = vld [vmem:[#allocation4 + $0x4ec] sm:$0xff]
    %v951 = vld [vmem:[#allocation4 + $0x4f4] sm:$0xff]
    %v952 = vld [vmem:[#allocation4 + $0x4fc] sm:$0xf]
    %v953 = vld [vmem:[#allocation4 + $0x500] sm:$0xff]
    %v954 = vld [vmem:[#allocation4 + $0x508] sm:$0xff]
    %v955 = vld [vmem:[#allocation4 + $0x510] sm:$0xf]
    %v956 = vld [vmem:[#allocation4 + $0x514] sm:$0xff]
    %v957 = vld [vmem:[#allocation4 + $0x51c] sm:$0xff]
    %v958 = vld [vmem:[#allocation4 + $0x524] sm:$0xf]
    %v959 = vld [vmem:[#allocation4 + $0x528] sm:$0xff]
    %v960 = vld [vmem:[#allocation4 + $0x530] sm:$0xff]
    %v961 = vld [vmem:[#allocation4 + $0x538] sm:$0xf]
    %v962 = vld [vmem:[#allocation4 + $0x53c] sm:$0xff]
    %v963 = vld [vmem:[#allocation4 + $0x544] sm:$0xff]
    %v964 = vld [vmem:[#allocation4 + $0x54c] sm:$0xf]
    %v965 = vld [vmem:[#allocation4 + $0x550] sm:$0xff]
    %v966 = vld [vmem:[#allocation4 + $0x558] sm:$0xff]
    %v967 = vld [vmem:[#allocation4 + $0x560] sm:$0xf]
    %v968 = vld [vmem:[#allocation4 + $0x564] sm:$0xff]
    %v969 = vld [vmem:[#allocation4 + $0x56c] sm:$0xff]
    %v970 = vld [vmem:[#allocation4 + $0x574] sm:$0xf]
    %v971 = vld [vmem:[#allocation4 + $0x578] sm:$0xff]
    %v972 = vld [vmem:[#allocation4 + $0x580] sm:$0xff]
    %v973 = vld [vmem:[#allocation4 + $0x588] sm:$0xf]
    %v974 = vld [vmem:[#allocation4 + $0x58c] sm:$0xff]
    %v975 = vld [vmem:[#allocation4 + $0x594] sm:$0xff]
    %v976 = vld [vmem:[#allocation4 + $0x59c] sm:$0xf]
    %v977 = vld [vmem:[#allocation4 + $0x5a0] sm:$0xff]
    %v978 = vld [vmem:[#allocation4 + $0x5a8] sm:$0xff]
    %v979 = vld [vmem:[#allocation4 + $0x5b0] sm:$0xf]
    %v980 = vld [vmem:[#allocation4 + $0x5b4] sm:$0xff]
    %v981 = vld [vmem:[#allocation4 + $0x5bc] sm:$0xff]
    %v982 = vld [vmem:[#allocation4 + $0x5c4] sm:$0xf]
    %v983 = vld [vmem:[#allocation4 + $0x5c8] sm:$0xff]
    %v984 = vld [vmem:[#allocation4 + $0x5d0] sm:$0xff]
    %v985 = vld [vmem:[#allocation4 + $0x5d8] sm:$0xf]
    %v986 = vld [vmem:[#allocation4 + $0x5dc] sm:$0xff]
    %v987 = vld [vmem:[#allocation4 + $0x5e4] sm:$0xff]
    %v988 = vld [vmem:[#allocation4 + $0x5ec] sm:$0xf]
    %v989 = vld [vmem:[#allocation4 + $0x5f0] sm:$0xff]
    %v990 = vld [vmem:[#allocation4 + $0x5f8] sm:$0xff]
    %v991 = vld [vmem:[#allocation4 + $0x600] sm:$0xf]
    %v992 = vld [vmem:[#allocation4 + $0x604] sm:$0xff]
    %v993 = vld [vmem:[#allocation4 + $0x60c] sm:$0xff]
    %v994 = vld [vmem:[#allocation4 + $0x614] sm:$0xf]
    %v995 = vld [vmem:[#allocation4 + $0x618] sm:$0xff]
    %v996 = vld [vmem:[#allocation4 + $0x620] sm:$0xff]
    %v997 = vld [vmem:[#allocation4 + $0x628] sm:$0xf]
    %v998 = vld [vmem:[#allocation4 + $0x62c] sm:$0xff]
    %v999 = vld [vmem:[#allocation4 + $0x634] sm:$0xff]
    %v1000 = vld [vmem:[#allocation4 + $0x63c] sm:$0xf]
    %v1001 = vld [vmem:[%s4] sm:$0x1f]
    %v1003 = vlaneseq
    %v1004 = vshrl.u32 %v1003, 7
    %v1005 = vsub.s32 0, %v1004
    %v1006 = vrot.slane %v1001, %v1005
    %v1007 = vlaneseq
    %v1008 = vshrl.u32 %v1007, 7
    %v1009 = vsub.s32 1, %v1008
    %v1010 = vrot.slane %v1001, %v1009
    %v1011 = vlaneseq
    %v1012 = vshrl.u32 %v1011, 7
    %v1013 = vsub.s32 2, %v1012
    %v1014 = vrot.slane %v1001, %v1013
    %v1015 = vlaneseq
    %v1016 = vshrl.u32 %v1015, 7
    %v1017 = vsub.s32 3, %v1016
    %v1018 = vrot.slane %v1001, %v1017
    %v1019 = vlaneseq
    %v1020 = vshrl.u32 %v1019, 7
    %v1021 = vsub.s32 4, %v1020
    %v1022 = vrot.slane %v1001, %v1021
    %v1268 = vunpack.c.l.b16 %v761
    %v1269 = vunpack.c.h.b16 %v761
    %v1270 = vunpack.c.l.b16 %v762
    %v1271 = vunpack.c.h.b16 %v762
    %v1272 = vunpack.c.l.b16 %v763
    %v1273 = vunpack.c.l.b16 %v764
    %v1274 = vunpack.c.h.b16 %v764
    %v1275 = vunpack.c.l.b16 %v765
    %v1276 = vunpack.c.h.b16 %v765
    %v1277 = vunpack.c.l.b16 %v766
    %v1278 = vunpack.c.l.b16 %v767
    %v1279 = vunpack.c.h.b16 %v767
    %v1280 = vunpack.c.l.b16 %v768
    %v1281 = vunpack.c.h.b16 %v768
    %v1282 = vunpack.c.l.b16 %v769
    %v1283 = vunpack.c.l.b16 %v770
    %v1284 = vunpack.c.h.b16 %v770
    %v1285 = vunpack.c.l.b16 %v771
    %v1286 = vunpack.c.h.b16 %v771
    %v1287 = vunpack.c.l.b16 %v772
    %v1288 = vunpack.c.l.b16 %v773
    %v1289 = vunpack.c.h.b16 %v773
    %v1290 = vunpack.c.l.b16 %v774
    %v1291 = vunpack.c.h.b16 %v774
    %v1292 = vunpack.c.l.b16 %v775
    %v1293 = vunpack.c.l.b16 %v776
    %v1294 = vunpack.c.h.b16 %v776
    %v1295 = vunpack.c.l.b16 %v777
    %v1296 = vunpack.c.h.b16 %v777
    %v1297 = vunpack.c.l.b16 %v778
    %v1298 = vunpack.c.l.b16 %v779
    %v1299 = vunpack.c.h.b16 %v779
    %v1300 = vunpack.c.l.b16 %v780
    %v1301 = vunpack.c.h.b16 %v780
    %v1302 = vunpack.c.l.b16 %v781
    %v1303 = vunpack.c.l.b16 %v782
    %v1304 = vunpack.c.h.b16 %v782
    %v1305 = vunpack.c.l.b16 %v783
    %v1306 = vunpack.c.h.b16 %v783
    %v1307 = vunpack.c.l.b16 %v784
    %v1308 = vunpack.c.l.b16 %v785
    %v1309 = vunpack.c.h.b16 %v785
    %v1310 = vunpack.c.l.b16 %v786
    %v1311 = vunpack.c.h.b16 %v786
    %v1312 = vunpack.c.l.b16 %v787
    %v1313 = vunpack.c.l.b16 %v788
    %v1314 = vunpack.c.h.b16 %v788
    %v1315 = vunpack.c.l.b16 %v789
    %v1316 = vunpack.c.h.b16 %v789
    %v1317 = vunpack.c.l.b16 %v790
    %v1318 = vunpack.c.l.b16 %v791
    %v1319 = vunpack.c.h.b16 %v791
    %v1320 = vunpack.c.l.b16 %v792
    %v1321 = vunpack.c.h.b16 %v792
    %v1322 = vunpack.c.l.b16 %v793
    %v1323 = vunpack.c.l.b16 %v794
    %v1324 = vunpack.c.h.b16 %v794
    %v1325 = vunpack.c.l.b16 %v795
    %v1326 = vunpack.c.h.b16 %v795
    %v1327 = vunpack.c.l.b16 %v796
    %v1328 = vunpack.c.l.b16 %v797
    %v1329 = vunpack.c.h.b16 %v797
    %v1330 = vunpack.c.l.b16 %v798
    %v1331 = vunpack.c.h.b16 %v798
    %v1332 = vunpack.c.l.b16 %v799
    %v1333 = vunpack.c.l.b16 %v800
    %v1334 = vunpack.c.h.b16 %v800
    %v1335 = vunpack.c.l.b16 %v801
    %v1336 = vunpack.c.h.b16 %v801
    %v1337 = vunpack.c.l.b16 %v802
    %v1338 = vunpack.c.l.b16 %v803
    %v1339 = vunpack.c.h.b16 %v803
    %v1340 = vunpack.c.l.b16 %v804
    %v1341 = vunpack.c.h.b16 %v804
    %v1342 = vunpack.c.l.b16 %v805
    %v1343 = vunpack.c.l.b16 %v806
    %v1344 = vunpack.c.h.b16 %v806
    %v1345 = vunpack.c.l.b16 %v807
    %v1346 = vunpack.c.h.b16 %v807
    %v1347 = vunpack.c.l.b16 %v808
    %v1348 = vunpack.c.l.b16 %v809
    %v1349 = vunpack.c.h.b16 %v809
    %v1350 = vunpack.c.l.b16 %v810
    %v1351 = vunpack.c.h.b16 %v810
    %v1352 = vunpack.c.l.b16 %v811
    %v1353 = vunpack.c.l.b16 %v812
    %v1354 = vunpack.c.h.b16 %v812
    %v1355 = vunpack.c.l.b16 %v813
    %v1356 = vunpack.c.h.b16 %v813
    %v1357 = vunpack.c.l.b16 %v814
    %v1358 = vunpack.c.l.b16 %v815
    %v1359 = vunpack.c.h.b16 %v815
    %v1360 = vunpack.c.l.b16 %v816
    %v1361 = vunpack.c.h.b16 %v816
    %v1362 = vunpack.c.l.b16 %v817
    %v1363 = vunpack.c.l.b16 %v818
    %v1364 = vunpack.c.h.b16 %v818
    %v1365 = vunpack.c.l.b16 %v819
    %v1366 = vunpack.c.h.b16 %v819
    %v1367 = vunpack.c.l.b16 %v820
    %v1368 = vunpack.c.l.b16 %v821
    %v1369 = vunpack.c.h.b16 %v821
    %v1370 = vunpack.c.l.b16 %v822
    %v1371 = vunpack.c.h.b16 %v822
    %v1372 = vunpack.c.l.b16 %v823
    %v1373 = vunpack.c.l.b16 %v824
    %v1374 = vunpack.c.h.b16 %v824
    %v1375 = vunpack.c.l.b16 %v825
    %v1376 = vunpack.c.h.b16 %v825
    %v1377 = vunpack.c.l.b16 %v826
    %v1378 = vunpack.c.l.b16 %v827
    %v1379 = vunpack.c.h.b16 %v827
    %v1380 = vunpack.c.l.b16 %v828
    %v1381 = vunpack.c.h.b16 %v828
    %v1382 = vunpack.c.l.b16 %v829
    %v1383 = vunpack.c.l.b16 %v830
    %v1384 = vunpack.c.h.b16 %v830
    %v1385 = vunpack.c.l.b16 %v831
    %v1386 = vunpack.c.h.b16 %v831
    %v1387 = vunpack.c.l.b16 %v832
    %v1388 = vunpack.c.l.b16 %v833
    %v1389 = vunpack.c.h.b16 %v833
    %v1390 = vunpack.c.l.b16 %v834
    %v1391 = vunpack.c.h.b16 %v834
    %v1392 = vunpack.c.l.b16 %v835
    %v1393 = vunpack.c.l.b16 %v836
    %v1394 = vunpack.c.h.b16 %v836
    %v1395 = vunpack.c.l.b16 %v837
    %v1396 = vunpack.c.h.b16 %v837
    %v1397 = vunpack.c.l.b16 %v838
    %v1398 = vunpack.c.l.b16 %v839
    %v1399 = vunpack.c.h.b16 %v839
    %v1400 = vunpack.c.l.b16 %v840
    %v1401 = vunpack.c.h.b16 %v840
    %v1402 = vunpack.c.l.b16 %v841
    %v1403 = vunpack.c.l.b16 %v842
    %v1404 = vunpack.c.h.b16 %v842
    %v1405 = vunpack.c.l.b16 %v843
    %v1406 = vunpack.c.h.b16 %v843
    %v1407 = vunpack.c.l.b16 %v844
    %v1408 = vunpack.c.l.b16 %v845
    %v1409 = vunpack.c.h.b16 %v845
    %v1410 = vunpack.c.l.b16 %v846
    %v1411 = vunpack.c.h.b16 %v846
    %v1412 = vunpack.c.l.b16 %v847
    %v1413 = vunpack.c.l.b16 %v848
    %v1414 = vunpack.c.h.b16 %v848
    %v1415 = vunpack.c.l.b16 %v849
    %v1416 = vunpack.c.h.b16 %v849
    %v1417 = vunpack.c.l.b16 %v850
    %v1418 = vunpack.c.l.b16 %v851
    %v1419 = vunpack.c.h.b16 %v851
    %v1420 = vunpack.c.l.b16 %v852
    %v1421 = vunpack.c.h.b16 %v852
    %v1422 = vunpack.c.l.b16 %v853
    %v1423 = vunpack.c.l.b16 %v854
    %v1424 = vunpack.c.h.b16 %v854
    %v1425 = vunpack.c.l.b16 %v855
    %v1426 = vunpack.c.h.b16 %v855
    %v1427 = vunpack.c.l.b16 %v856
    %v1428 = vunpack.c.l.b16 %v857
    %v1429 = vunpack.c.h.b16 %v857
    %v1430 = vunpack.c.l.b16 %v858
    %v1431 = vunpack.c.h.b16 %v858
    %v1432 = vunpack.c.l.b16 %v859
    %v1433 = vunpack.c.l.b16 %v860
    %v1434 = vunpack.c.h.b16 %v860
    %v1435 = vunpack.c.l.b16 %v861
    %v1436 = vunpack.c.h.b16 %v861
    %v1437 = vunpack.c.l.b16 %v862
    %v1438 = vunpack.c.l.b16 %v863
    %v1439 = vunpack.c.h.b16 %v863
    %v1440 = vunpack.c.l.b16 %v864
    %v1441 = vunpack.c.h.b16 %v864
    %v1442 = vunpack.c.l.b16 %v865
    %v1443 = vunpack.c.l.b16 %v866
    %v1444 = vunpack.c.h.b16 %v866
    %v1445 = vunpack.c.l.b16 %v867
    %v1446 = vunpack.c.h.b16 %v867
    %v1447 = vunpack.c.l.b16 %v868
    %v1448 = vunpack.c.l.b16 %v869
    %v1449 = vunpack.c.h.b16 %v869
    %v1450 = vunpack.c.l.b16 %v870
    %v1451 = vunpack.c.h.b16 %v870
    %v1452 = vunpack.c.l.b16 %v871
    %v1453 = vunpack.c.l.b16 %v872
    %v1454 = vunpack.c.h.b16 %v872
    %v1455 = vunpack.c.l.b16 %v873
    %v1456 = vunpack.c.h.b16 %v873
    %v1457 = vunpack.c.l.b16 %v874
    %v1458 = vunpack.c.l.b16 %v875
    %v1459 = vunpack.c.h.b16 %v875
    %v1460 = vunpack.c.l.b16 %v876
    %v1461 = vunpack.c.h.b16 %v876
    %v1462 = vunpack.c.l.b16 %v877
    %v1463 = vunpack.c.l.b16 %v878
    %v1464 = vunpack.c.h.b16 %v878
    %v1465 = vunpack.c.l.b16 %v879
    %v1466 = vunpack.c.h.b16 %v879
    %v1467 = vunpack.c.l.b16 %v880
    %v1468 = vunpack.c.l.b16 %v881
    %v1469 = vunpack.c.h.b16 %v881
    %v1470 = vunpack.c.l.b16 %v882
    %v1471 = vunpack.c.h.b16 %v882
    %v1472 = vunpack.c.l.b16 %v883
    %v1473 = vunpack.c.l.b16 %v884
    %v1474 = vunpack.c.h.b16 %v884
    %v1475 = vunpack.c.l.b16 %v885
    %v1476 = vunpack.c.h.b16 %v885
    %v1477 = vunpack.c.l.b16 %v886
    %v1478 = vunpack.c.l.b16 %v887
    %v1479 = vunpack.c.h.b16 %v887
    %v1480 = vunpack.c.l.b16 %v888
    %v1481 = vunpack.c.h.b16 %v888
    %v1482 = vunpack.c.l.b16 %v889
    %v1483 = vunpack.c.l.b16 %v890
    %v1484 = vunpack.c.h.b16 %v890
    %v1485 = vunpack.c.l.b16 %v891
    %v1486 = vunpack.c.h.b16 %v891
    %v1487 = vunpack.c.l.b16 %v892
    %v1488 = vunpack.c.l.b16 %v893
    %v1489 = vunpack.c.h.b16 %v893
    %v1490 = vunpack.c.l.b16 %v894
    %v1491 = vunpack.c.h.b16 %v894
    %v1492 = vunpack.c.l.b16 %v895
    %v1493 = vunpack.c.l.b16 %v896
    %v1494 = vunpack.c.h.b16 %v896
    %v1495 = vunpack.c.l.b16 %v897
    %v1496 = vunpack.c.h.b16 %v897
    %v1497 = vunpack.c.l.b16 %v898
    %v1498 = vunpack.c.l.b16 %v899
    %v1499 = vunpack.c.h.b16 %v899
    %v1500 = vunpack.c.l.b16 %v900
    %v1501 = vunpack.c.h.b16 %v900
    %v1502 = vunpack.c.l.b16 %v901
    %v1503 = vunpack.c.l.b16 %v902
    %v1504 = vunpack.c.h.b16 %v902
    %v1505 = vunpack.c.l.b16 %v903
    %v1506 = vunpack.c.h.b16 %v903
    %v1507 = vunpack.c.l.b16 %v904
    %v1508 = vunpack.c.l.b16 %v905
    %v1509 = vunpack.c.h.b16 %v905
    %v1510 = vunpack.c.l.b16 %v906
    %v1511 = vunpack.c.h.b16 %v906
    %v1512 = vunpack.c.l.b16 %v907
    %v1513 = vunpack.c.l.b16 %v908
    %v1514 = vunpack.c.h.b16 %v908
    %v1515 = vunpack.c.l.b16 %v909
    %v1516 = vunpack.c.h.b16 %v909
    %v1517 = vunpack.c.l.b16 %v910
    %v1518 = vunpack.c.l.b16 %v911
    %v1519 = vunpack.c.h.b16 %v911
    %v1520 = vunpack.c.l.b16 %v912
    %v1521 = vunpack.c.h.b16 %v912
    %v1522 = vunpack.c.l.b16 %v913
    %v1523 = vunpack.c.l.b16 %v914
    %v1524 = vunpack.c.h.b16 %v914
    %v1525 = vunpack.c.l.b16 %v915
    %v1526 = vunpack.c.h.b16 %v915
    %v1527 = vunpack.c.l.b16 %v916
    %v1528 = vunpack.c.l.b16 %v917
    %v1529 = vunpack.c.h.b16 %v917
    %v1530 = vunpack.c.l.b16 %v918
    %v1531 = vunpack.c.h.b16 %v918
    %v1532 = vunpack.c.l.b16 %v919
    %v1533 = vunpack.c.l.b16 %v920
    %v1534 = vunpack.c.h.b16 %v920
    %v1535 = vunpack.c.l.b16 %v921
    %v1536 = vunpack.c.h.b16 %v921
    %v1537 = vunpack.c.l.b16 %v922
    %v1538 = vunpack.c.l.b16 %v923
    %v1539 = vunpack.c.h.b16 %v923
    %v1540 = vunpack.c.l.b16 %v924
    %v1541 = vunpack.c.h.b16 %v924
    %v1542 = vunpack.c.l.b16 %v925
    %v1543 = vunpack.c.l.b16 %v926
    %v1544 = vunpack.c.h.b16 %v926
    %v1545 = vunpack.c.l.b16 %v927
    %v1546 = vunpack.c.h.b16 %v927
    %v1547 = vunpack.c.l.b16 %v928
    %v1548 = vunpack.c.l.b16 %v929
    %v1549 = vunpack.c.h.b16 %v929
    %v1550 = vunpack.c.l.b16 %v930
    %v1551 = vunpack.c.h.b16 %v930
    %v1552 = vunpack.c.l.b16 %v931
    %v1553 = vunpack.c.l.b16 %v932
    %v1554 = vunpack.c.h.b16 %v932
    %v1555 = vunpack.c.l.b16 %v933
    %v1556 = vunpack.c.h.b16 %v933
    %v1557 = vunpack.c.l.b16 %v934
    %v1558 = vunpack.c.l.b16 %v935
    %v1559 = vunpack.c.h.b16 %v935
    %v1560 = vunpack.c.l.b16 %v936
    %v1561 = vunpack.c.h.b16 %v936
    %v1562 = vunpack.c.l.b16 %v937
    %v1563 = vunpack.c.l.b16 %v938
    %v1564 = vunpack.c.h.b16 %v938
    %v1565 = vunpack.c.l.b16 %v939
    %v1566 = vunpack.c.h.b16 %v939
    %v1567 = vunpack.c.l.b16 %v940
    %v1568 = vunpack.c.l.b16 %v941
    %v1569 = vunpack.c.h.b16 %v941
    %v1570 = vunpack.c.l.b16 %v942
    %v1571 = vunpack.c.h.b16 %v942
    %v1572 = vunpack.c.l.b16 %v943
    %v1573 = vunpack.c.l.b16 %v944
    %v1574 = vunpack.c.h.b16 %v944
    %v1575 = vunpack.c.l.b16 %v945
    %v1576 = vunpack.c.h.b16 %v945
    %v1577 = vunpack.c.l.b16 %v946
    %v1578 = vunpack.c.l.b16 %v947
    %v1579 = vunpack.c.h.b16 %v947
    %v1580 = vunpack.c.l.b16 %v948
    %v1581 = vunpack.c.h.b16 %v948
    %v1582 = vunpack.c.l.b16 %v949
    %v1583 = vunpack.c.l.b16 %v950
    %v1584 = vunpack.c.h.b16 %v950
    %v1585 = vunpack.c.l.b16 %v951
    %v1586 = vunpack.c.h.b16 %v951
    %v1587 = vunpack.c.l.b16 %v952
    %v1588 = vunpack.c.l.b16 %v953
    %v1589 = vunpack.c.h.b16 %v953
    %v1590 = vunpack.c.l.b16 %v954
    %v1591 = vunpack.c.h.b16 %v954
    %v1592 = vunpack.c.l.b16 %v955
    %v1593 = vunpack.c.l.b16 %v956
    %v1594 = vunpack.c.h.b16 %v956
    %v1595 = vunpack.c.l.b16 %v957
    %v1596 = vunpack.c.h.b16 %v957
    %v1597 = vunpack.c.l.b16 %v958
    %v1598 = vunpack.c.l.b16 %v959
    %v1599 = vunpack.c.h.b16 %v959
    %v1600 = vunpack.c.l.b16 %v960
    %v1601 = vunpack.c.h.b16 %v960
    %v1602 = vunpack.c.l.b16 %v961
    %v1603 = vunpack.c.l.b16 %v962
    %v1604 = vunpack.c.h.b16 %v962
    %v1605 = vunpack.c.l.b16 %v963
    %v1606 = vunpack.c.h.b16 %v963
    %v1607 = vunpack.c.l.b16 %v964
    %v1608 = vunpack.c.l.b16 %v965
    %v1609 = vunpack.c.h.b16 %v965
    %v1610 = vunpack.c.l.b16 %v966
    %v1611 = vunpack.c.h.b16 %v966
    %v1612 = vunpack.c.l.b16 %v967
    %v1613 = vunpack.c.l.b16 %v968
    %v1614 = vunpack.c.h.b16 %v968
    %v1615 = vunpack.c.l.b16 %v969
    %v1616 = vunpack.c.h.b16 %v969
    %v1617 = vunpack.c.l.b16 %v970
    %v1618 = vunpack.c.l.b16 %v971
    %v1619 = vunpack.c.h.b16 %v971
    %v1620 = vunpack.c.l.b16 %v972
    %v1621 = vunpack.c.h.b16 %v972
    %v1622 = vunpack.c.l.b16 %v973
    %v1623 = vunpack.c.l.b16 %v974
    %v1624 = vunpack.c.h.b16 %v974
    %v1625 = vunpack.c.l.b16 %v975
    %v1626 = vunpack.c.h.b16 %v975
    %v1627 = vunpack.c.l.b16 %v976
    %v1628 = vunpack.c.l.b16 %v977
    %v1629 = vunpack.c.h.b16 %v977
    %v1630 = vunpack.c.l.b16 %v978
    %v1631 = vunpack.c.h.b16 %v978
    %v1632 = vunpack.c.l.b16 %v979
    %v1633 = vunpack.c.l.b16 %v980
    %v1634 = vunpack.c.h.b16 %v980
    %v1635 = vunpack.c.l.b16 %v981
    %v1636 = vunpack.c.h.b16 %v981
    %v1637 = vunpack.c.l.b16 %v982
    %v1638 = vunpack.c.l.b16 %v983
    %v1639 = vunpack.c.h.b16 %v983
    %v1640 = vunpack.c.l.b16 %v984
    %v1641 = vunpack.c.h.b16 %v984
    %v1642 = vunpack.c.l.b16 %v985
    %v1643 = vunpack.c.l.b16 %v986
    %v1644 = vunpack.c.h.b16 %v986
    %v1645 = vunpack.c.l.b16 %v987
    %v1646 = vunpack.c.h.b16 %v987
    %v1647 = vunpack.c.l.b16 %v988
    %v1648 = vunpack.c.l.b16 %v989
    %v1649 = vunpack.c.h.b16 %v989
    %v1650 = vunpack.c.l.b16 %v990
    %v1651 = vunpack.c.h.b16 %v990
    %v1652 = vunpack.c.l.b16 %v991
    %v1653 = vunpack.c.l.b16 %v992
    %v1654 = vunpack.c.h.b16 %v992
    %v1655 = vunpack.c.l.b16 %v993
    %v1656 = vunpack.c.h.b16 %v993
    %v1657 = vunpack.c.l.b16 %v994
    %v1658 = vunpack.c.l.b16 %v995
    %v1659 = vunpack.c.h.b16 %v995
    %v1660 = vunpack.c.l.b16 %v996
    %v1661 = vunpack.c.h.b16 %v996
    %v1662 = vunpack.c.l.b16 %v997
    %v1663 = vunpack.c.l.b16 %v998
    %v1664 = vunpack.c.h.b16 %v998
    %v1665 = vunpack.c.l.b16 %v999
    %v1666 = vunpack.c.h.b16 %v999
    %v1667 = vunpack.c.l.b16 %v1000
    %v1668 = vpack.c.b16 %v1273, %v1268
    %v1669 = vpack.c.b16 %v1274, %v1269
    %v1670 = vpack.c.b16 %v1275, %v1270
    %v1671 = vpack.c.b16 %v1276, %v1271
    %v1672 = vpack.c.b16 %v1277, %v1272
    %v1673 = vpack.c.b16 %v1283, %v1278
    %v1674 = vpack.c.b16 %v1284, %v1279
    %v1675 = vpack.c.b16 %v1285, %v1280
    %v1676 = vpack.c.b16 %v1286, %v1281
    %v1677 = vpack.c.b16 %v1287, %v1282
    %v1678 = vpack.c.b16 %v1293, %v1288
    %v1679 = vpack.c.b16 %v1294, %v1289
    %v1680 = vpack.c.b16 %v1295, %v1290
    %v1681 = vpack.c.b16 %v1296, %v1291
    %v1682 = vpack.c.b16 %v1297, %v1292
    %v1683 = vpack.c.b16 %v1303, %v1298
    %v1684 = vpack.c.b16 %v1304, %v1299
    %v1685 = vpack.c.b16 %v1305, %v1300
    %v1686 = vpack.c.b16 %v1306, %v1301
    %v1687 = vpack.c.b16 %v1307, %v1302
    %v1688 = vpack.c.b16 %v1313, %v1308
    %v1689 = vpack.c.b16 %v1314, %v1309
    %v1690 = vpack.c.b16 %v1315, %v1310
    %v1691 = vpack.c.b16 %v1316, %v1311
    %v1692 = vpack.c.b16 %v1317, %v1312
    %v1693 = vpack.c.b16 %v1323, %v1318
    %v1694 = vpack.c.b16 %v1324, %v1319
    %v1695 = vpack.c.b16 %v1325, %v1320
    %v1696 = vpack.c.b16 %v1326, %v1321
    %v1697 = vpack.c.b16 %v1327, %v1322
    %v1698 = vpack.c.b16 %v1333, %v1328
    %v1699 = vpack.c.b16 %v1334, %v1329
    %v1700 = vpack.c.b16 %v1335, %v1330
    %v1701 = vpack.c.b16 %v1336, %v1331
    %v1702 = vpack.c.b16 %v1337, %v1332
    %v1703 = vpack.c.b16 %v1343, %v1338
    %v1704 = vpack.c.b16 %v1344, %v1339
    %v1705 = vpack.c.b16 %v1345, %v1340
    %v1706 = vpack.c.b16 %v1346, %v1341
    %v1707 = vpack.c.b16 %v1347, %v1342
    %v1708 = vpack.c.b16 %v1353, %v1348
    %v1709 = vpack.c.b16 %v1354, %v1349
    %v1710 = vpack.c.b16 %v1355, %v1350
    %v1711 = vpack.c.b16 %v1356, %v1351
    %v1712 = vpack.c.b16 %v1357, %v1352
    %v1713 = vpack.c.b16 %v1363, %v1358
    %v1714 = vpack.c.b16 %v1364, %v1359
    %v1715 = vpack.c.b16 %v1365, %v1360
    %v1716 = vpack.c.b16 %v1366, %v1361
    %v1717 = vpack.c.b16 %v1367, %v1362
    %v1718 = vpack.c.b16 %v1373, %v1368
    %v1719 = vpack.c.b16 %v1374, %v1369
    %v1720 = vpack.c.b16 %v1375, %v1370
    %v1721 = vpack.c.b16 %v1376, %v1371
    %v1722 = vpack.c.b16 %v1377, %v1372
    %v1723 = vpack.c.b16 %v1383, %v1378
    %v1724 = vpack.c.b16 %v1384, %v1379
    %v1725 = vpack.c.b16 %v1385, %v1380
    %v1726 = vpack.c.b16 %v1386, %v1381
    %v1727 = vpack.c.b16 %v1387, %v1382
    %v1728 = vpack.c.b16 %v1393, %v1388
    %v1729 = vpack.c.b16 %v1394, %v1389
    %v1730 = vpack.c.b16 %v1395, %v1390
    %v1731 = vpack.c.b16 %v1396, %v1391
    %v1732 = vpack.c.b16 %v1397, %v1392
    %v1733 = vpack.c.b16 %v1403, %v1398
    %v1734 = vpack.c.b16 %v1404, %v1399
    %v1735 = vpack.c.b16 %v1405, %v1400
    %v1736 = vpack.c.b16 %v1406, %v1401
    %v1737 = vpack.c.b16 %v1407, %v1402
    %v1738 = vpack.c.b16 %v1413, %v1408
    %v1739 = vpack.c.b16 %v1414, %v1409
    %v1740 = vpack.c.b16 %v1415, %v1410
    %v1741 = vpack.c.b16 %v1416, %v1411
    %v1742 = vpack.c.b16 %v1417, %v1412
    %v1743 = vpack.c.b16 %v1423, %v1418
    %v1744 = vpack.c.b16 %v1424, %v1419
    %v1745 = vpack.c.b16 %v1425, %v1420
    %v1746 = vpack.c.b16 %v1426, %v1421
    %v1747 = vpack.c.b16 %v1427, %v1422
    %v1748 = vpack.c.b16 %v1433, %v1428
    %v1749 = vpack.c.b16 %v1434, %v1429
    %v1750 = vpack.c.b16 %v1435, %v1430
    %v1751 = vpack.c.b16 %v1436, %v1431
    %v1752 = vpack.c.b16 %v1437, %v1432
    %v1753 = vpack.c.b16 %v1443, %v1438
    %v1754 = vpack.c.b16 %v1444, %v1439
    %v1755 = vpack.c.b16 %v1445, %v1440
    %v1756 = vpack.c.b16 %v1446, %v1441
    %v1757 = vpack.c.b16 %v1447, %v1442
    %v1758 = vpack.c.b16 %v1453, %v1448
    %v1759 = vpack.c.b16 %v1454, %v1449
    %v1760 = vpack.c.b16 %v1455, %v1450
    %v1761 = vpack.c.b16 %v1456, %v1451
    %v1762 = vpack.c.b16 %v1457, %v1452
    %v1763 = vpack.c.b16 %v1463, %v1458
    %v1764 = vpack.c.b16 %v1464, %v1459
    %v1765 = vpack.c.b16 %v1465, %v1460
    %v1766 = vpack.c.b16 %v1466, %v1461
    %v1767 = vpack.c.b16 %v1467, %v1462
    %v1768 = vpack.c.b16 %v1473, %v1468
    %v1769 = vpack.c.b16 %v1474, %v1469
    %v1770 = vpack.c.b16 %v1475, %v1470
    %v1771 = vpack.c.b16 %v1476, %v1471
    %v1772 = vpack.c.b16 %v1477, %v1472
    %v1773 = vpack.c.b16 %v1483, %v1478
    %v1774 = vpack.c.b16 %v1484, %v1479
    %v1775 = vpack.c.b16 %v1485, %v1480
    %v1776 = vpack.c.b16 %v1486, %v1481
    %v1777 = vpack.c.b16 %v1487, %v1482
    %v1778 = vpack.c.b16 %v1493, %v1488
    %v1779 = vpack.c.b16 %v1494, %v1489
    %v1780 = vpack.c.b16 %v1495, %v1490
    %v1781 = vpack.c.b16 %v1496, %v1491
    %v1782 = vpack.c.b16 %v1497, %v1492
    %v1783 = vpack.c.b16 %v1503, %v1498
    %v1784 = vpack.c.b16 %v1504, %v1499
    %v1785 = vpack.c.b16 %v1505, %v1500
    %v1786 = vpack.c.b16 %v1506, %v1501
    %v1787 = vpack.c.b16 %v1507, %v1502
    %v1788 = vpack.c.b16 %v1513, %v1508
    %v1789 = vpack.c.b16 %v1514, %v1509
    %v1790 = vpack.c.b16 %v1515, %v1510
    %v1791 = vpack.c.b16 %v1516, %v1511
    %v1792 = vpack.c.b16 %v1517, %v1512
    %v1793 = vpack.c.b16 %v1523, %v1518
    %v1794 = vpack.c.b16 %v1524, %v1519
    %v1795 = vpack.c.b16 %v1525, %v1520
    %v1796 = vpack.c.b16 %v1526, %v1521
    %v1797 = vpack.c.b16 %v1527, %v1522
    %v1798 = vpack.c.b16 %v1533, %v1528
    %v1799 = vpack.c.b16 %v1534, %v1529
    %v1800 = vpack.c.b16 %v1535, %v1530
    %v1801 = vpack.c.b16 %v1536, %v1531
    %v1802 = vpack.c.b16 %v1537, %v1532
    %v1803 = vpack.c.b16 %v1543, %v1538
    %v1804 = vpack.c.b16 %v1544, %v1539
    %v1805 = vpack.c.b16 %v1545, %v1540
    %v1806 = vpack.c.b16 %v1546, %v1541
    %v1807 = vpack.c.b16 %v1547, %v1542
    %v1808 = vpack.c.b16 %v1553, %v1548
    %v1809 = vpack.c.b16 %v1554, %v1549
    %v1810 = vpack.c.b16 %v1555, %v1550
    %v1811 = vpack.c.b16 %v1556, %v1551
    %v1812 = vpack.c.b16 %v1557, %v1552
    %v1813 = vpack.c.b16 %v1563, %v1558
    %v1814 = vpack.c.b16 %v1564, %v1559
    %v1815 = vpack.c.b16 %v1565, %v1560
    %v1816 = vpack.c.b16 %v1566, %v1561
    %v1817 = vpack.c.b16 %v1567, %v1562
    %v1818 = vpack.c.b16 %v1573, %v1568
    %v1819 = vpack.c.b16 %v1574, %v1569
    %v1820 = vpack.c.b16 %v1575, %v1570
    %v1821 = vpack.c.b16 %v1576, %v1571
    %v1822 = vpack.c.b16 %v1577, %v1572
    %v1823 = vpack.c.b16 %v1583, %v1578
    %v1824 = vpack.c.b16 %v1584, %v1579
    %v1825 = vpack.c.b16 %v1585, %v1580
    %v1826 = vpack.c.b16 %v1586, %v1581
    %v1827 = vpack.c.b16 %v1587, %v1582
    %v1828 = vpack.c.b16 %v1593, %v1588
    %v1829 = vpack.c.b16 %v1594, %v1589
    %v1830 = vpack.c.b16 %v1595, %v1590
    %v1831 = vpack.c.b16 %v1596, %v1591
    %v1832 = vpack.c.b16 %v1597, %v1592
    %v1833 = vpack.c.b16 %v1603, %v1598
    %v1834 = vpack.c.b16 %v1604, %v1599
    %v1835 = vpack.c.b16 %v1605, %v1600
    %v1836 = vpack.c.b16 %v1606, %v1601
    %v1837 = vpack.c.b16 %v1607, %v1602
    %v1838 = vpack.c.b16 %v1613, %v1608
    %v1839 = vpack.c.b16 %v1614, %v1609
    %v1840 = vpack.c.b16 %v1615, %v1610
    %v1841 = vpack.c.b16 %v1616, %v1611
    %v1842 = vpack.c.b16 %v1617, %v1612
    %v1843 = vpack.c.b16 %v1623, %v1618
    %v1844 = vpack.c.b16 %v1624, %v1619
    %v1845 = vpack.c.b16 %v1625, %v1620
    %v1846 = vpack.c.b16 %v1626, %v1621
    %v1847 = vpack.c.b16 %v1627, %v1622
    %v1848 = vpack.c.b16 %v1633, %v1628
    %v1849 = vpack.c.b16 %v1634, %v1629
    %v1850 = vpack.c.b16 %v1635, %v1630
    %v1851 = vpack.c.b16 %v1636, %v1631
    %v1852 = vpack.c.b16 %v1637, %v1632
    %v1853 = vpack.c.b16 %v1643, %v1638
    %v1854 = vpack.c.b16 %v1644, %v1639
    %v1855 = vpack.c.b16 %v1645, %v1640
    %v1856 = vpack.c.b16 %v1646, %v1641
    %v1857 = vpack.c.b16 %v1647, %v1642
    %v1858 = vpack.c.b16 %v1653, %v1648
    %v1859 = vpack.c.b16 %v1654, %v1649
    %v1860 = vpack.c.b16 %v1655, %v1650
    %v1861 = vpack.c.b16 %v1656, %v1651
    %v1862 = vpack.c.b16 %v1657, %v1652
    %v1863 = vpack.c.b16 %v1663, %v1658
    %v1864 = vpack.c.b16 %v1664, %v1659
    %v1865 = vpack.c.b16 %v1665, %v1660
    %v1866 = vpack.c.b16 %v1666, %v1661
    %v1867 = vpack.c.b16 %v1667, %v1662
    %2068 = vmatprep.subr.bf16.mxu0 %v1669
    %2069 = vmatpush1.bf16.msra.mxu0 %v1668
    %2070 = vmatprep.subr.bf16.mxu0 %v1674
    %2071 = vmatpush1.bf16.msra.mxu0 %v1673
    %2072 = vmatprep.subr.bf16.mxu0 %v1679
    %2073 = vmatpush1.bf16.msra.mxu0 %v1678
    %2074 = vmatprep.subr.bf16.mxu0 %v1684
    %2075 = vmatpush1.bf16.msra.mxu0 %v1683
    %2076 = vmatprep.subr.bf16.mxu0 %v1689
    %2077 = vmatpush1.bf16.msra.mxu0 %v1688
    %2078 = vmatprep.subr.bf16.mxu0 %v1694
    %2079 = vmatpush1.bf16.msra.mxu0 %v1693
    %2080 = vmatprep.subr.bf16.mxu0 %v1699
    %2081 = vmatpush1.bf16.msra.mxu0 %v1698
    %2082 = vmatprep.subr.bf16.mxu0 %v1704
    %2083 = vmatpush1.bf16.msra.mxu0 %v1703
    %2084 = vmatprep.subr.bf16.mxu0 %v1709
    %2085 = vmatpush1.bf16.msra.mxu0 %v1708
    %2086 = vmatprep.subr.bf16.mxu0 %v1714
    %2087 = vmatpush1.bf16.msra.mxu0 %v1713
    %2088 = vmatprep.subr.bf16.mxu0 %v1719
    %2089 = vmatpush1.bf16.msra.mxu0 %v1718
    %2090 = vmatprep.subr.bf16.mxu0 %v1724
    %2091 = vmatpush1.bf16.msra.mxu0 %v1723
    %2092 = vmatprep.subr.bf16.mxu0 %v1729
    %2093 = vmatpush1.bf16.msra.mxu0 %v1728
    %2094 = vmatprep.subr.bf16.mxu0 %v1734
    %2095 = vmatpush1.bf16.msra.mxu0 %v1733
    %2096 = vmatprep.subr.bf16.mxu0 %v1739
    %2097 = vmatpush1.bf16.msra.mxu0 %v1738
    %2098 = vmatprep.subr.bf16.mxu0 %v1744
    %2099 = vmatpush1.bf16.msra.mxu0 %v1743
    %2100 = vmatprep.mubr.bf16.mxu0 %v757
    %2101 = vmatmul.mubr.bf16.gmra.mrb[0].mxu0 %v756
    %v2102 = vpop.f32.mrb[0].mxu0
    %v2103 = vadd.f32 %v1006, %v2102
    %v2104 = vpop.f32.mrb[0].mxu0
    %v2105 = vadd.f32 %v1010, %v2104
    %v2106 = vpop.f32.mrb[0].mxu0
    %v2107 = vadd.f32 %v1006, %v2106
    %v2108 = vpop.f32.mrb[0].mxu0
    %v2109 = vadd.f32 %v1010, %v2108
    %2110 = vdwg.mxu0
    %2111 = vmatprep.subr.bf16.mxu0 %v1749
    %2112 = vmatpush1.bf16.msra.mxu0 %v1748
    %2113 = vmatprep.subr.bf16.mxu0 %v1754
    %2114 = vmatpush1.bf16.msra.mxu0 %v1753
    %2115 = vmatprep.subr.bf16.mxu0 %v1759
    %2116 = vmatpush1.bf16.msra.mxu0 %v1758
    %2117 = vmatprep.subr.bf16.mxu0 %v1764
    %2118 = vmatpush1.bf16.msra.mxu0 %v1763
    %2119 = vmatprep.subr.bf16.mxu0 %v1769
    %2120 = vmatpush1.bf16.msra.mxu0 %v1768
    %2121 = vmatprep.subr.bf16.mxu0 %v1774
    %2122 = vmatpush1.bf16.msra.mxu0 %v1773
    %2123 = vmatprep.subr.bf16.mxu0 %v1779
    %2124 = vmatpush1.bf16.msra.mxu0 %v1778
    %2125 = vmatprep.subr.bf16.mxu0 %v1784
    %2126 = vmatpush1.bf16.msra.mxu0 %v1783
    %2127 = vmatprep.subr.bf16.mxu0 %v1789
    %2128 = vmatpush1.bf16.msra.mxu0 %v1788
    %2129 = vmatprep.subr.bf16.mxu0 %v1794
    %2130 = vmatpush1.bf16.msra.mxu0 %v1793
    %2131 = vmatprep.subr.bf16.mxu0 %v1799
    %2132 = vmatpush1.bf16.msra.mxu0 %v1798
    %2133 = vmatprep.subr.bf16.mxu0 %v1804
    %2134 = vmatpush1.bf16.msra.mxu0 %v1803
    %2135 = vmatprep.subr.bf16.mxu0 %v1809
    %2136 = vmatpush1.bf16.msra.mxu0 %v1808
    %2137 = vmatprep.subr.bf16.mxu0 %v1814
    %2138 = vmatpush1.bf16.msra.mxu0 %v1813
    %2139 = vmatprep.subr.bf16.mxu0 %v1819
    %2140 = vmatpush1.bf16.msra.mxu0 %v1818
    %2141 = vmatprep.subr.bf16.mxu0 %v1824
    %2142 = vmatpush1.bf16.msra.mxu0 %v1823
    %2143 = vmatprep.mubr.bf16.mxu0 %v759
    %2144 = vmatmul.mubr.bf16.gmra.mrb[0].mxu0 %v758
    %v2145 = vpop.f32.mrb[0].mxu0
    %v2146 = vadd.f32 %v2103, %v2145
    %v2147 = vpop.f32.mrb[0].mxu0
    %v2148 = vadd.f32 %v2105, %v2147
    %v2149 = vpop.f32.mrb[0].mxu0
    %v2150 = vadd.f32 %v2107, %v2149
    %v2151 = vpop.f32.mrb[0].mxu0
    %v2152 = vadd.f32 %v2109, %v2151
    %2153 = vdwg.mxu0
    %2154 = vmatprep.subr.bf16.mxu0 %v1829
    %2155 = vmatpush1.bf16.msra.mxu0 %v1828
    %2156 = vmatprep.subr.bf16.mxu0 %v1834
    %2157 = vmatpush1.bf16.msra.mxu0 %v1833
    %2158 = vmatprep.subr.bf16.mxu0 %v1839
    %2159 = vmatpush1.bf16.msra.mxu0 %v1838
    %2160 = vmatprep.subr.bf16.mxu0 %v1844
    %2161 = vmatpush1.bf16.msra.mxu0 %v1843
    %2162 = vmatprep.subr.bf16.mxu0 %v1849
    %2163 = vmatpush1.bf16.msra.mxu0 %v1848
    %2164 = vmatprep.subr.bf16.mxu0 %v1854
    %2165 = vmatpush1.bf16.msra.mxu0 %v1853
    %2166 = vmatprep.subr.bf16.mxu0 %v1859
    %2167 = vmatpush1.bf16.msra.mxu0 %v1858
    %2168 = vmatprep.subr.bf16.mxu0 %v1864
    %2169 = vmatpush1.bf16.msra.mxu0 %v1863
    %2170 = vmatprep.subr.bf16.mxu0 0
    %2171 = vmatpush1.bf16.msra.mxu0 0
    %2172 = vmatprep.subr.bf16.mxu0 0
    %2173 = vmatpush1.bf16.msra.mxu0 0
    %2174 = vmatprep.subr.bf16.mxu0 0
    %2175 = vmatpush1.bf16.msra.mxu0 0
    %2176 = vmatprep.subr.bf16.mxu0 0
    %2177 = vmatpush1.bf16.msra.mxu0 0
    %2178 = vmatprep.subr.bf16.mxu0 0
    %2179 = vmatpush1.bf16.msra.mxu0 0
    %2180 = vmatprep.subr.bf16.mxu0 0
    %2181 = vmatpush1.bf16.msra.mxu0 0
    %2182 = vmatprep.subr.bf16.mxu0 0
    %2183 = vmatpush1.bf16.msra.mxu0 0
    %2184 = vmatprep.subr.bf16.mxu0 0
    %2185 = vmatpush1.bf16.msra.mxu0 0
    %2186 = vmatprep.mubr.bf16.mxu0 0
    %2187 = vmatmul.mubr.bf16.gmra.mrb[0].mxu0 %v760
    %v2188 = vpop.f32.mrb[0].mxu0
    %v2189 = vadd.f32 %v2146, %v2188
    %v2190 = vpop.f32.mrb[0].mxu0
    %v2191 = vadd.f32 %v2148, %v2190
    %v2192 = vpop.f32.mrb[0].mxu0
    %v2193 = vadd.f32 %v2150, %v2192
    %v2194 = vpop.f32.mrb[0].mxu0
    %v2195 = vadd.f32 %v2152, %v2194
    %2196 = vdwg.mxu0
    %2197 = vmatprep.subr.bf16.mxu0 %v1671
    %2198 = vmatpush1.bf16.msra.mxu0 %v1670
    %2199 = vmatprep.subr.bf16.mxu0 %v1676
    %2200 = vmatpush1.bf16.msra.mxu0 %v1675
    %2201 = vmatprep.subr.bf16.mxu0 %v1681
    %2202 = vmatpush1.bf16.msra.mxu0 %v1680
    %2203 = vmatprep.subr.bf16.mxu0 %v1686
    %2204 = vmatpush1.bf16.msra.mxu0 %v1685
    %2205 = vmatprep.subr.bf16.mxu0 %v1691
    %2206 = vmatpush1.bf16.msra.mxu0 %v1690
    %2207 = vmatprep.subr.bf16.mxu0 %v1696
    %2208 = vmatpush1.bf16.msra.mxu0 %v1695
    %2209 = vmatprep.subr.bf16.mxu0 %v1701
    %2210 = vmatpush1.bf16.msra.mxu0 %v1700
    %2211 = vmatprep.subr.bf16.mxu0 %v1706
    %2212 = vmatpush1.bf16.msra.mxu0 %v1705
    %2213 = vmatprep.subr.bf16.mxu0 %v1711
    %2214 = vmatpush1.bf16.msra.mxu0 %v1710
    %2215 = vmatprep.subr.bf16.mxu0 %v1716
    %2216 = vmatpush1.bf16.msra.mxu0 %v1715
    %2217 = vmatprep.subr.bf16.mxu0 %v1721
    %2218 = vmatpush1.bf16.msra.mxu0 %v1720
    %2219 = vmatprep.subr.bf16.mxu0 %v1726
    %2220 = vmatpush1.bf16.msra.mxu0 %v1725
    %2221 = vmatprep.subr.bf16.mxu0 %v1731
    %2222 = vmatpush1.bf16.msra.mxu0 %v1730
    %2223 = vmatprep.subr.bf16.mxu0 %v1736
    %2224 = vmatpush1.bf16.msra.mxu0 %v1735
    %2225 = vmatprep.subr.bf16.mxu0 %v1741
    %2226 = vmatpush1.bf16.msra.mxu0 %v1740
    %2227 = vmatprep.subr.bf16.mxu0 %v1746
    %2228 = vmatpush1.bf16.msra.mxu0 %v1745
    %2229 = vmatprep.mubr.bf16.mxu0 %v757
    %2230 = vmatmul.mubr.bf16.gmra.mrb[0].mxu0 %v756
    %v2231 = vpop.f32.mrb[0].mxu0
    %v2232 = vadd.f32 %v1014, %v2231
    %v2233 = vpop.f32.mrb[0].mxu0
    %v2234 = vadd.f32 %v1018, %v2233
    %v2235 = vpop.f32.mrb[0].mxu0
    %v2236 = vadd.f32 %v1014, %v2235
    %v2237 = vpop.f32.mrb[0].mxu0
    %v2238 = vadd.f32 %v1018, %v2237
    %2239 = vdwg.mxu0
    %2240 = vmatprep.subr.bf16.mxu0 %v1751
    %2241 = vmatpush1.bf16.msra.mxu0 %v1750
    %2242 = vmatprep.subr.bf16.mxu0 %v1756
    %2243 = vmatpush1.bf16.msra.mxu0 %v1755
    %2244 = vmatprep.subr.bf16.mxu0 %v1761
    %2245 = vmatpush1.bf16.msra.mxu0 %v1760
    %2246 = vmatprep.subr.bf16.mxu0 %v1766
    %2247 = vmatpush1.bf16.msra.mxu0 %v1765
    %2248 = vmatprep.subr.bf16.mxu0 %v1771
    %2249 = vmatpush1.bf16.msra.mxu0 %v1770
    %2250 = vmatprep.subr.bf16.mxu0 %v1776
    %2251 = vmatpush1.bf16.msra.mxu0 %v1775
    %2252 = vmatprep.subr.bf16.mxu0 %v1781
    %2253 = vmatpush1.bf16.msra.mxu0 %v1780
    %2254 = vmatprep.subr.bf16.mxu0 %v1786
    %2255 = vmatpush1.bf16.msra.mxu0 %v1785
    %2256 = vmatprep.subr.bf16.mxu0 %v1791
    %2257 = vmatpush1.bf16.msra.mxu0 %v1790
    %2258 = vmatprep.subr.bf16.mxu0 %v1796
    %2259 = vmatpush1.bf16.msra.mxu0 %v1795
    %2260 = vmatprep.subr.bf16.mxu0 %v1801
    %2261 = vmatpush1.bf16.msra.mxu0 %v1800
    %2262 = vmatprep.subr.bf16.mxu0 %v1806
    %2263 = vmatpush1.bf16.msra.mxu0 %v1805
    %2264 = vmatprep.subr.bf16.mxu0 %v1811
    %2265 = vmatpush1.bf16.msra.mxu0 %v1810
    %2266 = vmatprep.subr.bf16.mxu0 %v1816
    %2267 = vmatpush1.bf16.msra.mxu0 %v1815
    %2268 = vmatprep.subr.bf16.mxu0 %v1821
    %2269 = vmatpush1.bf16.msra.mxu0 %v1820
    %2270 = vmatprep.subr.bf16.mxu0 %v1826
    %2271 = vmatpush1.bf16.msra.mxu0 %v1825
    %2272 = vmatprep.mubr.bf16.mxu0 %v759
    %2273 = vmatmul.mubr.bf16.gmra.mrb[0].mxu0 %v758
    %v2274 = vpop.f32.mrb[0].mxu0
    %v2275 = vadd.f32 %v2232, %v2274
    %v2276 = vpop.f32.mrb[0].mxu0
    %v2277 = vadd.f32 %v2234, %v2276
    %v2278 = vpop.f32.mrb[0].mxu0
    %v2279 = vadd.f32 %v2236, %v2278
    %v2280 = vpop.f32.mrb[0].mxu0
    %v2281 = vadd.f32 %v2238, %v2280
    %2282 = vdwg.mxu0
    %2283 = vmatprep.subr.bf16.mxu0 %v1831
    %2284 = vmatpush1.bf16.msra.mxu0 %v1830
    %2285 = vmatprep.subr.bf16.mxu0 %v1836
    %2286 = vmatpush1.bf16.msra.mxu0 %v1835
    %2287 = vmatprep.subr.bf16.mxu0 %v1841
    %2288 = vmatpush1.bf16.msra.mxu0 %v1840
    %2289 = vmatprep.subr.bf16.mxu0 %v1846
    %2290 = vmatpush1.bf16.msra.mxu0 %v1845
    %2291 = vmatprep.subr.bf16.mxu0 %v1851
    %2292 = vmatpush1.bf16.msra.mxu0 %v1850
    %2293 = vmatprep.subr.bf16.mxu0 %v1856
    %2294 = vmatpush1.bf16.msra.mxu0 %v1855
    %2295 = vmatprep.subr.bf16.mxu0 %v1861
    %2296 = vmatpush1.bf16.msra.mxu0 %v1860
    %2297 = vmatprep.subr.bf16.mxu0 %v1866
    %2298 = vmatpush1.bf16.msra.mxu0 %v1865
    %2299 = vmatprep.subr.bf16.mxu0 0
    %2300 = vmatpush1.bf16.msra.mxu0 0
    %2301 = vmatprep.subr.bf16.mxu0 0
    %2302 = vmatpush1.bf16.msra.mxu0 0
    %2303 = vmatprep.subr.bf16.mxu0 0
    %2304 = vmatpush1.bf16.msra.mxu0 0
    %2305 = vmatprep.subr.bf16.mxu0 0
    %2306 = vmatpush1.bf16.msra.mxu0 0
    %2307 = vmatprep.subr.bf16.mxu0 0
    %2308 = vmatpush1.bf16.msra.mxu0 0
    %2309 = vmatprep.subr.bf16.mxu0 0
    %2310 = vmatpush1.bf16.msra.mxu0 0
    %2311 = vmatprep.subr.bf16.mxu0 0
    %2312 = vmatpush1.bf16.msra.mxu0 0
    %2313 = vmatprep.subr.bf16.mxu0 0
    %2314 = vmatpush1.bf16.msra.mxu0 0
    %2315 = vmatprep.mubr.bf16.mxu0 0
    %2316 = vmatmul.mubr.bf16.gmra.mrb[0].mxu0 %v760
    %v2317 = vpop.f32.mrb[0].mxu0
    %v2318 = vadd.f32 %v2275, %v2317
    %v2319 = vpop.f32.mrb[0].mxu0
    %v2320 = vadd.f32 %v2277, %v2319
    %v2321 = vpop.f32.mrb[0].mxu0
    %v2322 = vadd.f32 %v2279, %v2321
    %v2323 = vpop.f32.mrb[0].mxu0
    %v2324 = vadd.f32 %v2281, %v2323
    %2325 = vdwg.mxu0
    %2326 = vmatprep.subr.bf16.mxu0 0
    %2327 = vmatpush1.bf16.msra.mxu0 %v1672
    %2328 = vmatprep.subr.bf16.mxu0 0
    %2329 = vmatpush1.bf16.msra.mxu0 %v1677
    %2330 = vmatprep.subr.bf16.mxu0 0
    %2331 = vmatpush1.bf16.msra.mxu0 %v1682
    %2332 = vmatprep.subr.bf16.mxu0 0
    %2333 = vmatpush1.bf16.msra.mxu0 %v1687
    %2334 = vmatprep.subr.bf16.mxu0 0
    %2335 = vmatpush1.bf16.msra.mxu0 %v1692
    %2336 = vmatprep.subr.bf16.mxu0 0
    %2337 = vmatpush1.bf16.msra.mxu0 %v1697
    %2338 = vmatprep.subr.bf16.mxu0 0
    %2339 = vmatpush1.bf16.msra.mxu0 %v1702
    %2340 = vmatprep.subr.bf16.mxu0 0
    %2341 = vmatpush1.bf16.msra.mxu0 %v1707
    %2342 = vmatprep.subr.bf16.mxu0 0
    %2343 = vmatpush1.bf16.msra.mxu0 %v1712
    %2344 = vmatprep.subr.bf16.mxu0 0
    %2345 = vmatpush1.bf16.msra.mxu0 %v1717
    %2346 = vmatprep.subr.bf16.mxu0 0
    %2347 = vmatpush1.bf16.msra.mxu0 %v1722
    %2348 = vmatprep.subr.bf16.mxu0 0
    %2349 = vmatpush1.bf16.msra.mxu0 %v1727
    %2350 = vmatprep.subr.bf16.mxu0 0
    %2351 = vmatpush1.bf16.msra.mxu0 %v1732
    %2352 = vmatprep.subr.bf16.mxu0 0
    %2353 = vmatpush1.bf16.msra.mxu0 %v1737
    %2354 = vmatprep.subr.bf16.mxu0 0
    %2355 = vmatpush1.bf16.msra.mxu0 %v1742
    %2356 = vmatprep.subr.bf16.mxu0 0
    %2357 = vmatpush1.bf16.msra.mxu0 %v1747
    %2358 = vmatprep.mubr.bf16.mxu0 %v757
    %2359 = vmatmul.mubr.bf16.gmra.mrb[0].mxu0 %v756
    %v2360 = vpop.f32.mrb[0].mxu0
    %v2361 = vadd.f32 %v1022, %v2360
    %v2362 = vpop.f32.mrb[0].mxu0
    %v2363 = vpop.f32.mrb[0].mxu0
    %v2364 = vadd.f32 %v1022, %v2363
    %v2365 = vpop.f32.mrb[0].mxu0
    %2366 = vdwg.mxu0
    %2367 = vmatprep.subr.bf16.mxu0 0
    %2368 = vmatpush1.bf16.msra.mxu0 %v1752
    %2369 = vmatprep.subr.bf16.mxu0 0
    %2370 = vmatpush1.bf16.msra.mxu0 %v1757
    %2371 = vmatprep.subr.bf16.mxu0 0
    %2372 = vmatpush1.bf16.msra.mxu0 %v1762
    %2373 = vmatprep.subr.bf16.mxu0 0
    %2374 = vmatpush1.bf16.msra.mxu0 %v1767
    %2375 = vmatprep.subr.bf16.mxu0 0
    %2376 = vmatpush1.bf16.msra.mxu0 %v1772
    %2377 = vmatprep.subr.bf16.mxu0 0
    %2378 = vmatpush1.bf16.msra.mxu0 %v1777
    %2379 = vmatprep.subr.bf16.mxu0 0
    %2380 = vmatpush1.bf16.msra.mxu0 %v1782
    %2381 = vmatprep.subr.bf16.mxu0 0
    %2382 = vmatpush1.bf16.msra.mxu0 %v1787
    %2383 = vmatprep.subr.bf16.mxu0 0
    %2384 = vmatpush1.bf16.msra.mxu0 %v1792
    %2385 = vmatprep.subr.bf16.mxu0 0
    %2386 = vmatpush1.bf16.msra.mxu0 %v1797
    %2387 = vmatprep.subr.bf16.mxu0 0
    %2388 = vmatpush1.bf16.msra.mxu0 %v1802
    %2389 = vmatprep.subr.bf16.mxu0 0
    %2390 = vmatpush1.bf16.msra.mxu0 %v1807
    %2391 = vmatprep.subr.bf16.mxu0 0
    %2392 = vmatpush1.bf16.msra.mxu0 %v1812
    %2393 = vmatprep.subr.bf16.mxu0 0
    %2394 = vmatpush1.bf16.msra.mxu0 %v1817
    %2395 = vmatprep.subr.bf16.mxu0 0
    %2396 = vmatpush1.bf16.msra.mxu0 %v1822
    %2397 = vmatprep.subr.bf16.mxu0 0
    %2398 = vmatpush1.bf16.msra.mxu0 %v1827
    %2399 = vmatprep.mubr.bf16.mxu0 %v759
    %2400 = vmatmul.mubr.bf16.gmra.mrb[0].mxu0 %v758
    %v2401 = vpop.f32.mrb[0].mxu0
    %v2402 = vadd.f32 %v2361, %v2401
    %v2403 = vpop.f32.mrb[0].mxu0
    %v2404 = vpop.f32.mrb[0].mxu0
    %v2405 = vadd.f32 %v2364, %v2404
    %v2406 = vpop.f32.mrb[0].mxu0
    %2407 = vdwg.mxu0
    %2408 = vmatprep.subr.bf16.mxu0 0
    %2409 = vmatpush1.bf16.msra.mxu0 %v1832
    %2410 = vmatprep.subr.bf16.mxu0 0
    %2411 = vmatpush1.bf16.msra.mxu0 %v1837
    %2412 = vmatprep.subr.bf16.mxu0 0
    %2413 = vmatpush1.bf16.msra.mxu0 %v1842
    %2414 = vmatprep.subr.bf16.mxu0 0
    %2415 = vmatpush1.bf16.msra.mxu0 %v1847
    %2416 = vmatprep.subr.bf16.mxu0 0
    %2417 = vmatpush1.bf16.msra.mxu0 %v1852
    %2418 = vmatprep.subr.bf16.mxu0 0
    %2419 = vmatpush1.bf16.msra.mxu0 %v1857
    %2420 = vmatprep.subr.bf16.mxu0 0
    %2421 = vmatpush1.bf16.msra.mxu0 %v1862
    %2422 = vmatprep.subr.bf16.mxu0 0
    %2423 = vmatpush1.bf16.msra.mxu0 %v1867
    %2424 = vmatprep.subr.bf16.mxu0 0
    %2425 = vmatpush1.bf16.msra.mxu0 0
    %2426 = vmatprep.subr.bf16.mxu0 0
    %2427 = vmatpush1.bf16.msra.mxu0 0
    %2428 = vmatprep.subr.bf16.mxu0 0
    %2429 = vmatpush1.bf16.msra.mxu0 0
    %2430 = vmatprep.subr.bf16.mxu0 0
    %2431 = vmatpush1.bf16.msra.mxu0 0
    %2432 = vmatprep.subr.bf16.mxu0 0
    %2433 = vmatpush1.bf16.msra.mxu0 0
    %2434 = vmatprep.subr.bf16.mxu0 0
    %2435 = vmatpush1.bf16.msra.mxu0 0
    %2436 = vmatprep.subr.bf16.mxu0 0
    %2437 = vmatpush1.bf16.msra.mxu0 0
    %2438 = vmatprep.subr.bf16.mxu0 0
    %2439 = vmatpush1.bf16.msra.mxu0 0
    %2440 = vmatprep.mubr.bf16.mxu0 0
    %2441 = vmatmul.mubr.bf16.gmra.mrb[0].mxu0 %v760
    %v2442 = vpop.f32.mrb[0].mxu0
    %v2443 = vadd.f32 %v2402, %v2442
    %v2444 = vpop.f32.mrb[0].mxu0
    %v2445 = vpop.f32.mrb[0].mxu0
    %v2446 = vadd.f32 %v2405, %v2445
    %v2447 = vpop.f32.mrb[0].mxu0
    %2448 = vdwg.mxu0
    %v2449 = vmax.f32 %v2189, 0.0
    %v2450 = vmax.f32 %v2191, 0.0
    %v2451 = vmax.f32 %v2318, 0.0
    %v2452 = vmax.f32 %v2320, 0.0
    %v2453 = vmax.f32 %v2443, 0.0
    %v2454 = vmax.f32 %v2193, 0.0
    %v2455 = vmax.f32 %v2195, 0.0
    %v2456 = vmax.f32 %v2322, 0.0
    %v2457 = vmax.f32 %v2324, 0.0
    %v2458 = vmax.f32 %v2446, 0.0
    %v2459 = vpack.c.bf16 %v2454, %v2449
    %v2460 = vpack.c.bf16 %v2455, %v2450
    %v2461 = vpack.c.bf16 %v2456, %v2451
    %v2462 = vpack.c.bf16 %v2457, %v2452
    %v2463 = vpack.c.bf16 %v2458, %v2453
    %v2464 = vld [vmem:[#allocation6] sm:$0xf]
    %v2465 = vld [vmem:[#allocation6 + $0x4] sm:$0xf]
    %v2466 = vld [vmem:[#allocation6 + $0x8] sm:$0xf]
    %v2467 = vld [vmem:[#allocation6 + $0xc] sm:$0xf]
    %v2468 = vld [vmem:[#allocation6 + $0x10] sm:$0xf]
    %v2469 = vld [vmem:[#allocation6 + $0x14] sm:$0xf]
    %v2470 = vld [vmem:[#allocation6 + $0x18] sm:$0xf]
    %v2471 = vld [vmem:[#allocation6 + $0x1c] sm:$0xf]
    %v2472 = vld [vmem:[#allocation6 + $0x20] sm:$0xf]
    %v2473 = vld [vmem:[#allocation6 + $0x24] sm:$0xf]
    %v2474 = vld [vmem:[#allocation6 + $0x28] sm:$0xf]
    %v2475 = vld [vmem:[#allocation6 + $0x2c] sm:$0xf]
    %v2476 = vld [vmem:[#allocation6 + $0x30] sm:$0xf]
    %v2477 = vld [vmem:[#allocation6 + $0x34] sm:$0xf]
    %v2478 = vld [vmem:[#allocation6 + $0x38] sm:$0xf]
    %v2479 = vld [vmem:[#allocation6 + $0x3c] sm:$0xf]
    %v2480 = vld [vmem:[#allocation6 + $0x40] sm:$0xf]
    %v2481 = vld [vmem:[#allocation6 + $0x44] sm:$0xf]
    %v2482 = vld [vmem:[#allocation6 + $0x48] sm:$0xf]
    %v2483 = vld [vmem:[#allocation6 + $0x4c] sm:$0xf]
    %v2484 = vld [vmem:[#allocation6 + $0x50] sm:$0xf]
    %v2485 = vld [vmem:[#allocation6 + $0x54] sm:$0xf]
    %v2486 = vld [vmem:[#allocation6 + $0x58] sm:$0xf]
    %v2487 = vld [vmem:[#allocation6 + $0x5c] sm:$0xf]
    %v2488 = vld [vmem:[#allocation6 + $0x60] sm:$0xf]
    %v2489 = vld [vmem:[#allocation6 + $0x64] sm:$0xf]
    %v2490 = vld [vmem:[#allocation6 + $0x68] sm:$0xf]
    %v2491 = vld [vmem:[#allocation6 + $0x6c] sm:$0xf]
    %v2492 = vld [vmem:[#allocation6 + $0x70] sm:$0xf]
    %v2493 = vld [vmem:[#allocation6 + $0x74] sm:$0xf]
    %v2494 = vld [vmem:[#allocation6 + $0x78] sm:$0xf]
    %v2495 = vld [vmem:[#allocation6 + $0x7c] sm:$0xf]
    %v2496 = vld [vmem:[#allocation6 + $0x80] sm:$0xf]
    %v2497 = vld [vmem:[#allocation6 + $0x84] sm:$0xf]
    %v2498 = vld [vmem:[#allocation6 + $0x88] sm:$0xf]
    %v2499 = vld [vmem:[#allocation6 + $0x8c] sm:$0xf]
    %v2500 = vld [vmem:[#allocation6 + $0x90] sm:$0xf]
    %v2501 = vld [vmem:[#allocation6 + $0x94] sm:$0xf]
    %v2502 = vld [vmem:[#allocation6 + $0x98] sm:$0xf]
    %v2503 = vld [vmem:[#allocation6 + $0x9c] sm:$0xf]
    %v2504 = vld [vmem:[#allocation6 + $0xa0] sm:$0xf]
    %v2505 = vld [vmem:[#allocation6 + $0xa4] sm:$0xf]
    %v2506 = vld [vmem:[#allocation6 + $0xa8] sm:$0xf]
    %v2507 = vld [vmem:[#allocation6 + $0xac] sm:$0xf]
    %v2508 = vld [vmem:[#allocation6 + $0xb0] sm:$0xf]
    %v2509 = vld [vmem:[#allocation6 + $0xb4] sm:$0xf]
    %v2510 = vld [vmem:[#allocation6 + $0xb8] sm:$0xf]
    %v2511 = vld [vmem:[#allocation6 + $0xbc] sm:$0xf]
    %v2512 = vld [vmem:[#allocation6 + $0xc0] sm:$0xf]
    %v2513 = vld [vmem:[#allocation6 + $0xc4] sm:$0xf]
    %v2514 = vld [vmem:[#allocation6 + $0xc8] sm:$0xf]
    %v2515 = vld [vmem:[#allocation6 + $0xcc] sm:$0xf]
    %v2516 = vld [vmem:[#allocation6 + $0xd0] sm:$0xf]
    %v2517 = vld [vmem:[#allocation6 + $0xd4] sm:$0xf]
    %v2518 = vld [vmem:[#allocation6 + $0xd8] sm:$0xf]
    %v2519 = vld [vmem:[#allocation6 + $0xdc] sm:$0xf]
    %v2520 = vld [vmem:[#allocation6 + $0xe0] sm:$0xf]
    %v2521 = vld [vmem:[#allocation6 + $0xe4] sm:$0xf]
    %v2522 = vld [vmem:[#allocation6 + $0xe8] sm:$0xf]
    %v2523 = vld [vmem:[#allocation6 + $0xec] sm:$0xf]
    %v2524 = vld [vmem:[#allocation6 + $0xf0] sm:$0xf]
    %v2525 = vld [vmem:[#allocation6 + $0xf4] sm:$0xf]
    %v2526 = vld [vmem:[#allocation6 + $0xf8] sm:$0xf]
    %v2527 = vld [vmem:[#allocation6 + $0xfc] sm:$0xf]
    %v2528 = vld [vmem:[#allocation6 + $0x100] sm:$0xf]
    %v2529 = vld [vmem:[#allocation6 + $0x104] sm:$0xf]
    %v2530 = vld [vmem:[#allocation6 + $0x108] sm:$0xf]
    %v2531 = vld [vmem:[#allocation6 + $0x10c] sm:$0xf]
    %v2532 = vld [vmem:[#allocation6 + $0x110] sm:$0xf]
    %v2533 = vld [vmem:[#allocation6 + $0x114] sm:$0xf]
    %v2534 = vld [vmem:[#allocation6 + $0x118] sm:$0xf]
    %v2535 = vld [vmem:[#allocation6 + $0x11c] sm:$0xf]
    %v2536 = vld [vmem:[#allocation6 + $0x120] sm:$0xf]
    %v2537 = vld [vmem:[#allocation6 + $0x124] sm:$0xf]
    %v2538 = vld [vmem:[#allocation6 + $0x128] sm:$0xf]
    %v2539 = vld [vmem:[#allocation6 + $0x12c] sm:$0xf]
    %v2540 = vld [vmem:[#allocation6 + $0x130] sm:$0xf]
    %v2541 = vld [vmem:[#allocation6 + $0x134] sm:$0xf]
    %v2542 = vld [vmem:[#allocation6 + $0x138] sm:$0xf]
    %v2543 = vld [vmem:[#allocation6 + $0x13c] sm:$0xf]
    %v2544 = vld [vmem:[%s6] sm:$0x1]
    %v2546 = vlaneseq
    %v2547 = vshrl.u32 %v2546, 7
    %v2548 = vsub.s32 0, %v2547
    %v2549 = vrot.slane %v2544, %v2548
    %v2631 = vunpack.c.l.b16 %v2464
    %v2632 = vunpack.c.l.b16 %v2465
    %v2633 = vunpack.c.l.b16 %v2466
    %v2634 = vunpack.c.l.b16 %v2467
    %v2635 = vunpack.c.l.b16 %v2468
    %v2636 = vunpack.c.l.b16 %v2469
    %v2637 = vunpack.c.l.b16 %v2470
    %v2638 = vunpack.c.l.b16 %v2471
    %v2639 = vunpack.c.l.b16 %v2472
    %v2640 = vunpack.c.l.b16 %v2473
    %v2641 = vunpack.c.l.b16 %v2474
    %v2642 = vunpack.c.l.b16 %v2475
    %v2643 = vunpack.c.l.b16 %v2476
    %v2644 = vunpack.c.l.b16 %v2477
    %v2645 = vunpack.c.l.b16 %v2478
    %v2646 = vunpack.c.l.b16 %v2479
    %v2647 = vunpack.c.l.b16 %v2480
    %v2648 = vunpack.c.l.b16 %v2481
    %v2649 = vunpack.c.l.b16 %v2482
    %v2650 = vunpack.c.l.b16 %v2483
    %v2651 = vunpack.c.l.b16 %v2484
    %v2652 = vunpack.c.l.b16 %v2485
    %v2653 = vunpack.c.l.b16 %v2486
    %v2654 = vunpack.c.l.b16 %v2487
    %v2655 = vunpack.c.l.b16 %v2488
    %v2656 = vunpack.c.l.b16 %v2489
    %v2657 = vunpack.c.l.b16 %v2490
    %v2658 = vunpack.c.l.b16 %v2491
    %v2659 = vunpack.c.l.b16 %v2492
    %v2660 = vunpack.c.l.b16 %v2493
    %v2661 = vunpack.c.l.b16 %v2494
    %v2662 = vunpack.c.l.b16 %v2495
    %v2663 = vunpack.c.l.b16 %v2496
    %v2664 = vunpack.c.l.b16 %v2497
    %v2665 = vunpack.c.l.b16 %v2498
    %v2666 = vunpack.c.l.b16 %v2499
    %v2667 = vunpack.c.l.b16 %v2500
    %v2668 = vunpack.c.l.b16 %v2501
    %v2669 = vunpack.c.l.b16 %v2502
    %v2670 = vunpack.c.l.b16 %v2503
    %v2671 = vunpack.c.l.b16 %v2504
    %v2672 = vunpack.c.l.b16 %v2505
    %v2673 = vunpack.c.l.b16 %v2506
    %v2674 = vunpack.c.l.b16 %v2507
    %v2675 = vunpack.c.l.b16 %v2508
    %v2676 = vunpack.c.l.b16 %v2509
    %v2677 = vunpack.c.l.b16 %v2510
    %v2678 = vunpack.c.l.b16 %v2511
    %v2679 = vunpack.c.l.b16 %v2512
    %v2680 = vunpack.c.l.b16 %v2513
    %v2681 = vunpack.c.l.b16 %v2514
    %v2682 = vunpack.c.l.b16 %v2515
    %v2683 = vunpack.c.l.b16 %v2516
    %v2684 = vunpack.c.l.b16 %v2517
    %v2685 = vunpack.c.l.b16 %v2518
    %v2686 = vunpack.c.l.b16 %v2519
    %v2687 = vunpack.c.l.b16 %v2520
    %v2688 = vunpack.c.l.b16 %v2521
    %v2689 = vunpack.c.l.b16 %v2522
    %v2690 = vunpack.c.l.b16 %v2523
    %v2691 = vunpack.c.l.b16 %v2524
    %v2692 = vunpack.c.l.b16 %v2525
    %v2693 = vunpack.c.l.b16 %v2526
    %v2694 = vunpack.c.l.b16 %v2527
    %v2695 = vunpack.c.l.b16 %v2528
    %v2696 = vunpack.c.l.b16 %v2529
    %v2697 = vunpack.c.l.b16 %v2530
    %v2698 = vunpack.c.l.b16 %v2531
    %v2699 = vunpack.c.l.b16 %v2532
    %v2700 = vunpack.c.l.b16 %v2533
    %v2701 = vunpack.c.l.b16 %v2534
    %v2702 = vunpack.c.l.b16 %v2535
    %v2703 = vunpack.c.l.b16 %v2536
    %v2704 = vunpack.c.l.b16 %v2537
    %v2705 = vunpack.c.l.b16 %v2538
    %v2706 = vunpack.c.l.b16 %v2539
    %v2707 = vunpack.c.l.b16 %v2540
    %v2708 = vunpack.c.l.b16 %v2541
    %v2709 = vunpack.c.l.b16 %v2542
    %v2710 = vunpack.c.l.b16 %v2543
    %v2711 = vpack.c.b16 %v2632, %v2631
    %v2712 = vpack.c.b16 %v2634, %v2633
    %v2713 = vpack.c.b16 %v2636, %v2635
    %v2714 = vpack.c.b16 %v2638, %v2637
    %v2715 = vpack.c.b16 %v2640, %v2639
    %v2716 = vpack.c.b16 %v2642, %v2641
    %v2717 = vpack.c.b16 %v2644, %v2643
    %v2718 = vpack.c.b16 %v2646, %v2645
    %v2719 = vpack.c.b16 %v2648, %v2647
    %v2720 = vpack.c.b16 %v2650, %v2649
    %v2721 = vpack.c.b16 %v2652, %v2651
    %v2722 = vpack.c.b16 %v2654, %v2653
    %v2723 = vpack.c.b16 %v2656, %v2655
    %v2724 = vpack.c.b16 %v2658, %v2657
    %v2725 = vpack.c.b16 %v2660, %v2659
    %v2726 = vpack.c.b16 %v2662, %v2661
    %v2727 = vpack.c.b16 %v2664, %v2663
    %v2728 = vpack.c.b16 %v2666, %v2665
    %v2729 = vpack.c.b16 %v2668, %v2667
    %v2730 = vpack.c.b16 %v2670, %v2669
    %v2731 = vpack.c.b16 %v2672, %v2671
    %v2732 = vpack.c.b16 %v2674, %v2673
    %v2733 = vpack.c.b16 %v2676, %v2675
    %v2734 = vpack.c.b16 %v2678, %v2677
    %v2735 = vpack.c.b16 %v2680, %v2679
    %v2736 = vpack.c.b16 %v2682, %v2681
    %v2737 = vpack.c.b16 %v2684, %v2683
    %v2738 = vpack.c.b16 %v2686, %v2685
    %v2739 = vpack.c.b16 %v2688, %v2687
    %v2740 = vpack.c.b16 %v2690, %v2689
    %v2741 = vpack.c.b16 %v2692, %v2691
    %v2742 = vpack.c.b16 %v2694, %v2693
    %v2743 = vpack.c.b16 %v2696, %v2695
    %v2744 = vpack.c.b16 %v2698, %v2697
    %v2745 = vpack.c.b16 %v2700, %v2699
    %v2746 = vpack.c.b16 %v2702, %v2701
    %v2747 = vpack.c.b16 %v2704, %v2703
    %v2748 = vpack.c.b16 %v2706, %v2705
    %v2749 = vpack.c.b16 %v2708, %v2707
    %v2750 = vpack.c.b16 %v2710, %v2709
    %2791 = vmatprep.subr.bf16.mxu0 0
    %2792 = vmatpush1.bf16.msra.mxu0 %v2711
    %2793 = vmatprep.subr.bf16.mxu0 0
    %2794 = vmatpush1.bf16.msra.mxu0 %v2712
    %2795 = vmatprep.subr.bf16.mxu0 0
    %2796 = vmatpush1.bf16.msra.mxu0 %v2713
    %2797 = vmatprep.subr.bf16.mxu0 0
    %2798 = vmatpush1.bf16.msra.mxu0 %v2714
    %2799 = vmatprep.subr.bf16.mxu0 0
    %2800 = vmatpush1.bf16.msra.mxu0 %v2715
    %2801 = vmatprep.subr.bf16.mxu0 0
    %2802 = vmatpush1.bf16.msra.mxu0 %v2716
    %2803 = vmatprep.subr.bf16.mxu0 0
    %2804 = vmatpush1.bf16.msra.mxu0 %v2717
    %2805 = vmatprep.subr.bf16.mxu0 0
    %2806 = vmatpush1.bf16.msra.mxu0 %v2718
    %2807 = vmatprep.subr.bf16.mxu0 0
    %2808 = vmatpush1.bf16.msra.mxu0 %v2719
    %2809 = vmatprep.subr.bf16.mxu0 0
    %2810 = vmatpush1.bf16.msra.mxu0 %v2720
    %2811 = vmatprep.subr.bf16.mxu0 0
    %2812 = vmatpush1.bf16.msra.mxu0 %v2721
    %2813 = vmatprep.subr.bf16.mxu0 0
    %2814 = vmatpush1.bf16.msra.mxu0 %v2722
    %2815 = vmatprep.subr.bf16.mxu0 0
    %2816 = vmatpush1.bf16.msra.mxu0 %v2723
    %2817 = vmatprep.subr.bf16.mxu0 0
    %2818 = vmatpush1.bf16.msra.mxu0 %v2724
    %2819 = vmatprep.subr.bf16.mxu0 0
    %2820 = vmatpush1.bf16.msra.mxu0 %v2725
    %2821 = vmatprep.subr.bf16.mxu0 0
    %2822 = vmatpush1.bf16.msra.mxu0 %v2726
    %2823 = vmatprep.mubr.bf16.mxu0 %v2460
    %2824 = vmatmul.mubr.bf16.gmra.mrb[0].mxu0 %v2459
    %v2825 = vpop.f32.mrb[0].mxu0
    %v2826 = vadd.f32 %v2549, %v2825
    %v2827 = vpop.f32.mrb[0].mxu0
    %v2828 = vpop.f32.mrb[0].mxu0
    %v2829 = vadd.f32 %v2549, %v2828
    %v2830 = vpop.f32.mrb[0].mxu0
    %2831 = vdwg.mxu0
    %2832 = vmatprep.subr.bf16.mxu0 0
    %2833 = vmatpush1.bf16.msra.mxu0 %v2727
    %2834 = vmatprep.subr.bf16.mxu0 0
    %2835 = vmatpush1.bf16.msra.mxu0 %v2728
    %2836 = vmatprep.subr.bf16.mxu0 0
    %2837 = vmatpush1.bf16.msra.mxu0 %v2729
    %2838 = vmatprep.subr.bf16.mxu0 0
    %2839 = vmatpush1.bf16.msra.mxu0 %v2730
    %2840 = vmatprep.subr.bf16.mxu0 0
    %2841 = vmatpush1.bf16.msra.mxu0 %v2731
    %2842 = vmatprep.subr.bf16.mxu0 0
    %2843 = vmatpush1.bf16.msra.mxu0 %v2732
    %2844 = vmatprep.subr.bf16.mxu0 0
    %2845 = vmatpush1.bf16.msra.mxu0 %v2733
    %2846 = vmatprep.subr.bf16.mxu0 0
    %2847 = vmatpush1.bf16.msra.mxu0 %v2734
    %2848 = vmatprep.subr.bf16.mxu0 0
    %2849 = vmatpush1.bf16.msra.mxu0 %v2735
    %2850 = vmatprep.subr.bf16.mxu0 0
    %2851 = vmatpush1.bf16.msra.mxu0 %v2736
    %2852 = vmatprep.subr.bf16.mxu0 0
    %2853 = vmatpush1.bf16.msra.mxu0 %v2737
    %2854 = vmatprep.subr.bf16.mxu0 0
    %2855 = vmatpush1.bf16.msra.mxu0 %v2738
    %2856 = vmatprep.subr.bf16.mxu0 0
    %2857 = vmatpush1.bf16.msra.mxu0 %v2739
    %2858 = vmatprep.subr.bf16.mxu0 0
    %2859 = vmatpush1.bf16.msra.mxu0 %v2740
    %2860 = vmatprep.subr.bf16.mxu0 0
    %2861 = vmatpush1.bf16.msra.mxu0 %v2741
    %2862 = vmatprep.subr.bf16.mxu0 0
    %2863 = vmatpush1.bf16.msra.mxu0 %v2742
    %2864 = vmatprep.mubr.bf16.mxu0 %v2462
    %2865 = vmatmul.mubr.bf16.gmra.mrb[0].mxu0 %v2461
    %v2866 = vpop.f32.mrb[0].mxu0
    %v2867 = vadd.f32 %v2826, %v2866
    %v2868 = vpop.f32.mrb[0].mxu0
    %v2869 = vpop.f32.mrb[0].mxu0
    %v2870 = vadd.f32 %v2829, %v2869
    %v2871 = vpop.f32.mrb[0].mxu0
    %2872 = vdwg.mxu0
    %2873 = vmatprep.subr.bf16.mxu0 0
    %2874 = vmatpush1.bf16.msra.mxu0 %v2743
    %2875 = vmatprep.subr.bf16.mxu0 0
    %2876 = vmatpush1.bf16.msra.mxu0 %v2744
    %2877 = vmatprep.subr.bf16.mxu0 0
    %2878 = vmatpush1.bf16.msra.mxu0 %v2745
    %2879 = vmatprep.subr.bf16.mxu0 0
    %2880 = vmatpush1.bf16.msra.mxu0 %v2746
    %2881 = vmatprep.subr.bf16.mxu0 0
    %2882 = vmatpush1.bf16.msra.mxu0 %v2747
    %2883 = vmatprep.subr.bf16.mxu0 0
    %2884 = vmatpush1.bf16.msra.mxu0 %v2748
    %2885 = vmatprep.subr.bf16.mxu0 0
    %2886 = vmatpush1.bf16.msra.mxu0 %v2749
    %2887 = vmatprep.subr.bf16.mxu0 0
    %2888 = vmatpush1.bf16.msra.mxu0 %v2750
    %2889 = vmatprep.subr.bf16.mxu0 0
    %2890 = vmatpush1.bf16.msra.mxu0 0
    %2891 = vmatprep.subr.bf16.mxu0 0
    %2892 = vmatpush1.bf16.msra.mxu0 0
    %2893 = vmatprep.subr.bf16.mxu0 0
    %2894 = vmatpush1.bf16.msra.mxu0 0
    %2895 = vmatprep.subr.bf16.mxu0 0
    %2896 = vmatpush1.bf16.msra.mxu0 0
    %2897 = vmatprep.subr.bf16.mxu0 0
    %2898 = vmatpush1.bf16.msra.mxu0 0
    %2899 = vmatprep.subr.bf16.mxu0 0
    %2900 = vmatpush1.bf16.msra.mxu0 0
    %2901 = vmatprep.subr.bf16.mxu0 0
    %2902 = vmatpush1.bf16.msra.mxu0 0
    %2903 = vmatprep.subr.bf16.mxu0 0
    %2904 = vmatpush1.bf16.msra.mxu0 0
    %2905 = vmatprep.mubr.bf16.mxu0 0
    %2906 = vmatmul.mubr.bf16.gmra.mrb[0].mxu0 %v2463
    %v2907 = vpop.f32.mrb[0].mxu0
    %v2908 = vadd.f32 %v2867, %v2907
    %v2909 = vpop.f32.mrb[0].mxu0
    %v2910 = vpop.f32.mrb[0].mxu0
    %v2911 = vadd.f32 %v2870, %v2910
    %v2912 = vpop.f32.mrb[0].mxu0
    %2913 = vdwg.mxu0
    %2914 = vst [vmem:[%s7] sm:$0xff] %v2908
    %2915 = vst [vmem:[%s7 + $0x8] sm:$0xff] %v2911
    // Predicated region
    $region42: #{mlp_forward.1} parent=1 // pred_check
      _
    $region43: #{mlp_forward.1} parent=1 // pred_check_branch
      %2917 = sbr.rel (0) target = $region45
    $region44: #{mlp_forward.1} parent=1 // pred_region
      _
    $region45: #{mlp_forward.1} parent=1 // pred_fallthru
      _
    // Predicated region
    $region46: #{mlp_forward.1} parent=1 // pred_check
      _
    $region47: #{mlp_forward.1} parent=1 // pred_check_branch
      %2919 = sbr.rel (0) target = $region49
    $region48: #{mlp_forward.1} parent=1 // pred_region
      _
    $region49: #{mlp_forward.1} parent=1 // pred_fallthru
      _
    %2920 = vsyncpa [#allocation3], 1
    %2921 = vsyncpa [#allocation5], 1

</llo_original>
